<compile_context>
chip_gen: v6e
topology: v6e:2x2x1
jax: 0.10.0
libtpu: 0.0.40
codegen_flags: <defaults>
</compile_context>

<pallas_src>
import functools

import jax
import jax.numpy as jnp
from jax import lax
from jax.experimental import pallas as pl
from jax.experimental.pallas import tpu as pltpu


def _normalize_kernel(x_ref, xn_ref, *, inv_sqrt_temp):
    """Row-wise L2 normalize, with 1/sqrt(temperature) folded into the scale."""
    x = x_ref[...].astype(jnp.float32)
    sumsq = jnp.sum(x * x, axis=1, keepdims=True)
    # F.normalize eps=1e-12 on the norm  ==  1e-24 on the squared norm.
    scale = lax.rsqrt(jnp.maximum(sumsq, 1e-24)) * inv_sqrt_temp
    xn_ref[...] = (x * scale).astype(xn_ref.dtype)


def _supcon_kernel(xn_ref, xnt_ref, ycol_ref, yrow_ref, out_ref,
                   m_ref, l_ref, w_ref, c_ref):
    j = pl.program_id(1)

    @pl.when(j == 0)
    def _():
        m_ref[...] = jnp.full_like(m_ref, -jnp.inf)
        l_ref[...] = jnp.zeros_like(l_ref)
        w_ref[...] = jnp.zeros_like(w_ref)
        c_ref[...] = jnp.zeros_like(c_ref)

    # sim tile: (tm, D) @ (D, tn) -> (tm, tn); temperature already folded in.
    s = jnp.dot(xn_ref[...], xnt_ref[...], preferred_element_type=jnp.float32)

    # Label-equality mask for this tile (int32 compare, exact).
    mask = ycol_ref[...] == yrow_ref[...]                       # (tm, tn) bool

    # Online log-sum-exp over column tiles.
    m_prev = m_ref[...]
    m_new = jnp.maximum(m_prev, jnp.max(s, axis=1, keepdims=True))
    alpha = jnp.exp(m_prev - m_new)
    l_ref[...] = (l_ref[...] * alpha
                  + jnp.sum(jnp.exp(s - m_new), axis=1, keepdims=True))
    m_ref[...] = m_new

    # Running Σ_j [y_i==y_j]·sim_ij and Σ_j [y_i==y_j] (normalize at the end).
    w_ref[...] += jnp.sum(jnp.where(mask, s, 0.0), axis=1, keepdims=True)
    c_ref[...] += jnp.sum(mask.astype(jnp.float32), axis=1, keepdims=True)

    @pl.when(j == pl.num_programs(1) - 1)
    def _():
        lse = m_ref[...] + jnp.log(l_ref[...])
        # loss_i = lse_i - (Σ_j mask·sim)/count_i   (diagonal => count >= 1)
        out_ref[...] = lse - w_ref[...] / c_ref[...]


def _pick_block(b, requested):
    # Fall back to a single full-extent tile when the batch is not divisible
    # (full-array block shapes are always legal).
    return requested if (b % requested == 0) else b


def supervised_contrastive_loss(x, y, temperature=0.07,
                                block_m=128, block_n=128):
    """x: (B, D) float, y: (B,) integer labels -> scalar loss."""
    B, D = x.shape
    compute_dtype = x.dtype           # bf16 inputs stay bf16 on the MXU
    inv_sqrt_t = float(1.0 / float(temperature) ** 0.5)

    bm = _pick_block(B, block_m)
    bn = _pick_block(B, block_n)

    # ---- Kernel 1: normalize + fold temperature (row-tiled) ---------------
    norm_kernel = functools.partial(_normalize_kernel, inv_sqrt_temp=inv_sqrt_t)
    xn = pl.pallas_call(
        norm_kernel,
        out_shape=jax.ShapeDtypeStruct((B, D), compute_dtype),
        grid=(B // bm,),
        in_specs=[pl.BlockSpec((bm, D), lambda i: (i, 0))],
        out_specs=pl.BlockSpec((bm, D), lambda i: (i, 0)),
        compiler_params=pltpu.CompilerParams(
            dimension_semantics=("parallel",)),
    )(x)

    # One-time O(B·D) transpose so the main kernel feeds the MXU an NN matmul.
    xn_t = xn.T                                                  # (D, B)

    y_i32 = y.astype(jnp.int32)
    y_col = y_i32.reshape(B, 1)
    y_row = y_i32.reshape(1, B)

    grid = (B // bm, B // bn)
    itemsize = jnp.dtype(compute_dtype).itemsize
    cost = pl.CostEstimate(
        flops=2 * B * B * D,
        transcendentals=B * B,
        bytes_accessed=int(B * D * itemsize * (grid[0] + grid[1])
                           + 4 * B * (grid[0] + grid[1] + 1)),
    )

    # ---- Kernel 2: tiled similarity + online log-softmax + masked sums ----
    per_row = pl.pallas_call(
        _supcon_kernel,
        out_shape=jax.ShapeDtypeStruct((B, 1), jnp.float32),
        grid=grid,
        in_specs=[
            pl.BlockSpec((bm, D), lambda i, j: (i, 0)),   # xn   row tile
            pl.BlockSpec((D, bn), lambda i, j: (0, j)),   # xn^T column tile
            pl.BlockSpec((bm, 1), lambda i, j: (i, 0)),   # labels (rows)
            pl.BlockSpec((1, bn), lambda i, j: (0, j)),   # labels (cols)
        ],
        out_specs=pl.BlockSpec((bm, 1), lambda i, j: (i, 0)),
        scratch_shapes=[pltpu.VMEM((bm, 1), jnp.float32)] * 4,  # m, l, w, c
        compiler_params=pltpu.CompilerParams(
            dimension_semantics=("parallel", "arbitrary")),
        cost_estimate=cost,
    )(xn, xn_t, y_col, y_row)

    # Final mean over B per-row losses: trivial O(B) reduction in the wrapper.
    return jnp.mean(per_row)


def _reference_loss(x, y, temperature=0.07):
    """Pure-JAX reference mirroring the PyTorch forward."""
    xn = x / jnp.maximum(jnp.linalg.norm(x, axis=1, keepdims=True), 1e-12)
    sim = (xn @ xn.T) / temperature
    mask = (y[None, :] == y[:, None]).astype(jnp.float32)
    mask = mask / mask.sum(axis=1, keepdims=True)
    logp = jax.nn.log_softmax(sim, axis=1)
    return jnp.mean(jnp.sum(-logp * mask, axis=1))


if __name__ == "__main__":
    key = jax.random.PRNGKey(0)
    kx, ky = jax.random.split(key)

    # Small but tile-friendly: exercises the (2, 2) grid / online softmax path.
    B, D = 256, 32
    x = jax.random.normal(kx, (B, D), dtype=jnp.float32)
    y = jax.random.randint(ky, (B,), 0, 10, dtype=jnp.int32)

    loss_fn = jax.jit(functools.partial(supervised_contrastive_loss,
                                        temperature=0.07))
    loss = jax.block_until_ready(loss_fn(x, y))

    ref = _reference_loss(x, y, temperature=0.07)
    assert jnp.allclose(loss, ref, rtol=1e-4, atol=1e-4), (loss, ref)

    print("KERNEL_OK")
</pallas_src>

<mosaic_0001>
module attributes {stable_mosaic.version = 11 : i64} {
  func.func @_normalize_kernel(%arg0: i32, %arg1: memref<128x32xf32, #tpu.memory_space<vmem>>, %arg2: memref<128x32xf32, #tpu.memory_space<vmem>>) attributes {dimension_semantics = [#tpu.dimension_semantics<parallel>], iteration_bounds = array<i64: 2>, scalar_prefetch = 0 : i64, scratch_operands = 0 : i64, tpu.core_type = #tpu.core_type<tc>, window_params = [{transform_indices = @transform_0, window_bounds = array<i64: 128, 32>}, {transform_indices = @transform_1, window_bounds = array<i64: 128, 32>}]} {
    %c0 = arith.constant 0 : index
    %c0_0 = arith.constant 0 : index
    %0 = vector.load %arg1[%c0, %c0_0] : memref<128x32xf32, #tpu.memory_space<vmem>>, vector<128x32xf32>
    %1 = arith.mulf %0, %0 : vector<128x32xf32>
    %cst = arith.constant dense<0.000000e+00> : vector<128xf32>
    %2 = vector.multi_reduction <add>, %1, %cst [1] : vector<128x32xf32> to vector<128xf32>
    %3 = vector.shape_cast %2 : vector<128xf32> to vector<128x1xf32>
    %cst_1 = arith.constant 1.000000e-24 : f32
    %4 = vector.broadcast %cst_1 : f32 to vector<128x1xf32>
    %5 = arith.maximumf %3, %4 : vector<128x1xf32>
    %6 = math.rsqrt %5 : vector<128x1xf32>
    %cst_2 = arith.constant 3.77964473 : f32
    %7 = vector.broadcast %cst_2 : f32 to vector<128x1xf32>
    %8 = arith.mulf %6, %7 : vector<128x1xf32>
    %9 = vector.broadcast %8 : vector<128x1xf32> to vector<128x32xf32>
    %10 = arith.mulf %0, %9 : vector<128x32xf32>
    %c0_3 = arith.constant 0 : index
    %c0_4 = arith.constant 0 : index
    %11 = vector.load %arg2[%c0_3, %c0_4] : memref<128x32xf32, #tpu.memory_space<vmem>>, vector<128x32xf32>
    tpu.vector_store %arg2[%c0_3, %c0_4], %10 {strides = array<i32>} : memref<128x32xf32, #tpu.memory_space<vmem>>, vector<128x32xf32>,
    return
  }
  func.func @transform_0(%arg0: i32) -> (i32, i32) {
    %c0_i32 = arith.constant 0 : i32
    %c0_i32_0 = arith.constant 0 : i32
    return %arg0, %c0_i32 : i32, i32
  }
  func.func @transform_1(%arg0: i32) -> (i32, i32) {
    %c0_i32 = arith.constant 0 : i32
    %c0_i32_0 = arith.constant 0 : i32
    return %arg0, %c0_i32 : i32, i32
  }
}

module attributes {stable_mosaic.version = 11 : i64} {
  func.func @_supcon_kernel(%arg0: i32, %arg1: i32, %arg2: memref<128x32xf32, #tpu.memory_space<vmem>>, %arg3: memref<32x128xf32, #tpu.memory_space<vmem>>, %arg4: memref<128x1xi32, #tpu.memory_space<vmem>>, %arg5: memref<1x128xi32, #tpu.memory_space<vmem>>, %arg6: memref<128x1xf32, #tpu.memory_space<vmem>>, %arg7: memref<128x1xf32, #tpu.memory_space<vmem>>, %arg8: memref<128x1xf32, #tpu.memory_space<vmem>>, %arg9: memref<128x1xf32, #tpu.memory_space<vmem>>, %arg10: memref<128x1xf32, #tpu.memory_space<vmem>>) attributes {dimension_semantics = [#tpu.dimension_semantics<parallel>, #tpu.dimension_semantics<arbitrary>], iteration_bounds = array<i64: 2, 2>, scalar_prefetch = 0 : i64, scratch_operands = 4 : i64, tpu.core_type = #tpu.core_type<tc>, window_params = [{transform_indices = @transform_0, window_bounds = array<i64: 128, 32>}, {transform_indices = @transform_1, window_bounds = array<i64: 32, 128>}, {transform_indices = @transform_2, window_bounds = array<i64: 128, 1>}, {transform_indices = @transform_3, window_bounds = array<i64: 1, 128>}, {transform_indices = @transform_4, window_bounds = array<i64: 128, 1>}]} {
    %c0_i32 = arith.constant 0 : i32
    %0 = arith.cmpi eq, %arg1, %c0_i32 : i32
    %1 = arith.extui %0 : i1 to i32
    %c0_i32_0 = arith.constant 0 : i32
    %2 = arith.cmpi ne, %1, %c0_i32_0 : i32
    scf.if %2 {
      %cst_30 = arith.constant 0xFF800000 : f32
      %44 = vector.broadcast %cst_30 : f32 to vector<128x1xf32>
      %c0_31 = arith.constant 0 : index
      %c0_32 = arith.constant 0 : index
      %45 = vector.load %arg7[%c0_31, %c0_32] : memref<128x1xf32, #tpu.memory_space<vmem>>, vector<128x1xf32>
      tpu.vector_store %arg7[%c0_31, %c0_32], %44 {strides = array<i32>} : memref<128x1xf32, #tpu.memory_space<vmem>>, vector<128x1xf32>,
      %cst_33 = arith.constant 0.000000e+00 : f32
      %46 = vector.broadcast %cst_33 : f32 to vector<128x1xf32>
      %c0_34 = arith.constant 0 : index
      %c0_35 = arith.constant 0 : index
      %47 = vector.load %arg8[%c0_34, %c0_35] : memref<128x1xf32, #tpu.memory_space<vmem>>, vector<128x1xf32>
      tpu.vector_store %arg8[%c0_34, %c0_35], %46 {strides = array<i32>} : memref<128x1xf32, #tpu.memory_space<vmem>>, vector<128x1xf32>,
      %cst_36 = arith.constant 0.000000e+00 : f32
      %48 = vector.broadcast %cst_36 : f32 to vector<128x1xf32>
      %c0_37 = arith.constant 0 : index
      %c0_38 = arith.constant 0 : index
      %49 = vector.load %arg9[%c0_37, %c0_38] : memref<128x1xf32, #tpu.memory_space<vmem>>, vector<128x1xf32>
      tpu.vector_store %arg9[%c0_37, %c0_38], %48 {strides = array<i32>} : memref<128x1xf32, #tpu.memory_space<vmem>>, vector<128x1xf32>,
      %cst_39 = arith.constant 0.000000e+00 : f32
      %50 = vector.broadcast %cst_39 : f32 to vector<128x1xf32>
      %c0_40 = arith.constant 0 : index
      %c0_41 = arith.constant 0 : index
      %51 = vector.load %arg10[%c0_40, %c0_41] : memref<128x1xf32, #tpu.memory_space<vmem>>, vector<128x1xf32>
      tpu.vector_store %arg10[%c0_40, %c0_41], %50 {strides = array<i32>} : memref<128x1xf32, #tpu.memory_space<vmem>>, vector<128x1xf32>,
    } else {
    }
    %c0 = arith.constant 0 : index
    %c0_1 = arith.constant 0 : index
    %3 = vector.load %arg2[%c0, %c0_1] : memref<128x32xf32, #tpu.memory_space<vmem>>, vector<128x32xf32>
    %c0_2 = arith.constant 0 : index
    %c0_3 = arith.constant 0 : index
    %4 = vector.load %arg3[%c0_2, %c0_3] : memref<32x128xf32, #tpu.memory_space<vmem>>, vector<32x128xf32>
    %cst = arith.constant dense<0.000000e+00> : vector<128x128xf32>
    %5 = tpu.matmul %3, %4, %cst {dimension_numbers = #tpu.dot_dimension_numbers<[1], [0], [0], [1], [0, 0, 1, 1], [], []>} : vector<128x32xf32>, vector<32x128xf32>, vector<128x128xf32> -> vector<128x128xf32>
    %c0_4 = arith.constant 0 : index
    %c0_5 = arith.constant 0 : index
    %6 = vector.load %arg4[%c0_4, %c0_5] : memref<128x1xi32, #tpu.memory_space<vmem>>, vector<128x1xi32>
    %c0_6 = arith.constant 0 : index
    %c0_7 = arith.constant 0 : index
    %7 = vector.load %arg5[%c0_6, %c0_7] : memref<1x128xi32, #tpu.memory_space<vmem>>, vector<1x128xi32>
    %8 = vector.broadcast %6 : vector<128x1xi32> to vector<128x128xi32>
    %9 = vector.broadcast %7 : vector<1x128xi32> to vector<128x128xi32>
    %10 = arith.cmpi eq, %8, %9 : vector<128x128xi32>
    %c0_8 = arith.constant 0 : index
    %c0_9 = arith.constant 0 : index
    %11 = vector.load %arg7[%c0_8, %c0_9] : memref<128x1xf32, #tpu.memory_space<vmem>>, vector<128x1xf32>
    %cst_10 = arith.constant dense<0xFF800000> : vector<128xf32>
    %12 = vector.multi_reduction <maximumf>, %5, %cst_10 [1] : vector<128x128xf32> to vector<128xf32>
    %13 = vector.shape_cast %12 : vector<128xf32> to vector<128x1xf32>
    %14 = arith.maximumf %11, %13 : vector<128x1xf32>
    %15 = arith.subf %11, %14 : vector<128x1xf32>
    %16 = math.exp %15 : vector<128x1xf32>
    %c0_11 = arith.constant 0 : index
    %c0_12 = arith.constant 0 : index
    %17 = vector.load %arg8[%c0_11, %c0_12] : memref<128x1xf32, #tpu.memory_space<vmem>>, vector<128x1xf32>
    %18 = arith.mulf %17, %16 : vector<128x1xf32>
    %19 = vector.broadcast %14 : vector<128x1xf32> to vector<128x128xf32>
    %20 = arith.subf %5, %19 : vector<128x128xf32>
    %21 = math.exp %20 : vector<128x128xf32>
    %cst_13 = arith.constant dense<0.000000e+00> : vector<128xf32>
    %22 = vector.multi_reduction <add>, %21, %cst_13 [1] : vector<128x128xf32> to vector<128xf32>
    %23 = vector.shape_cast %22 : vector<128xf32> to vector<128x1xf32>
    %24 = arith.addf %18, %23 : vector<128x1xf32>
    %c0_14 = arith.constant 0 : index
    %c0_15 = arith.constant 0 : index
    %25 = vector.load %arg8[%c0_14, %c0_15] : memref<128x1xf32, #tpu.memory_space<vmem>>, vector<128x1xf32>
    tpu.vector_store %arg8[%c0_14, %c0_15], %24 {strides = array<i32>} : memref<128x1xf32, #tpu.memory_space<vmem>>, vector<128x1xf32>,
    %c0_16 = arith.constant 0 : index
    %c0_17 = arith.constant 0 : index
    %26 = vector.load %arg7[%c0_16, %c0_17] : memref<128x1xf32, #tpu.memory_space<vmem>>, vector<128x1xf32>
    tpu.vector_store %arg7[%c0_16, %c0_17], %14 {strides = array<i32>} : memref<128x1xf32, #tpu.memory_space<vmem>>, vector<128x1xf32>,
    %c0_18 = arith.constant 0 : index
    %c0_19 = arith.constant 0 : index
    %27 = vector.load %arg9[%c0_18, %c0_19] : memref<128x1xf32, #tpu.memory_space<vmem>>, vector<128x1xf32>
    %cst_20 = arith.constant 0.000000e+00 : f32
    %28 = vector.broadcast %cst_20 : f32 to vector<128x128xf32>
    %29 = arith.select %10, %5, %28 : vector<128x128xi1>, vector<128x128xf32>
    %cst_21 = arith.constant dense<0.000000e+00> : vector<128xf32>
    %30 = vector.multi_reduction <add>, %29, %cst_21 [1] : vector<128x128xf32> to vector<128xf32>
    %31 = vector.shape_cast %30 : vector<128xf32> to vector<128x1xf32>
    %32 = arith.addf %27, %31 : vector<128x1xf32>
    %c0_22 = arith.constant 0 : index
    %c0_23 = arith.constant 0 : index
    %33 = vector.load %arg9[%c0_22, %c0_23] : memref<128x1xf32, #tpu.memory_space<vmem>>, vector<128x1xf32>
    tpu.vector_store %arg9[%c0_22, %c0_23], %32 {strides = array<i32>} : memref<128x1xf32, #tpu.memory_space<vmem>>, vector<128x1xf32>,
    %c0_24 = arith.constant 0 : index
    %c0_25 = arith.constant 0 : index
    %34 = vector.load %arg10[%c0_24, %c0_25] : memref<128x1xf32, #tpu.memory_space<vmem>>, vector<128x1xf32>
    %35 = arith.extui %10 : vector<128x128xi1> to vector<128x128xi32>
    %36 = arith.sitofp %35 : vector<128x128xi32> to vector<128x128xf32>
    %cst_26 = arith.constant dense<0.000000e+00> : vector<128xf32>
    %37 = vector.multi_reduction <add>, %36, %cst_26 [1] : vector<128x128xf32> to vector<128xf32>
    %38 = vector.shape_cast %37 : vector<128xf32> to vector<128x1xf32>
    %39 = arith.addf %34, %38 : vector<128x1xf32>
    %c0_27 = arith.constant 0 : index
    %c0_28 = arith.constant 0 : index
    %40 = vector.load %arg10[%c0_27, %c0_28] : memref<128x1xf32, #tpu.memory_space<vmem>>, vector<128x1xf32>
    tpu.vector_store %arg10[%c0_27, %c0_28], %39 {strides = array<i32>} : memref<128x1xf32, #tpu.memory_space<vmem>>, vector<128x1xf32>,
    %c1_i32 = arith.constant 1 : i32
    %41 = arith.cmpi eq, %arg1, %c1_i32 : i32
    %42 = arith.extui %41 : i1 to i32
    %c0_i32_29 = arith.constant 0 : i32
    %43 = arith.cmpi ne, %42, %c0_i32_29 : i32
    scf.if %43 {
      %c0_30 = arith.constant 0 : index
      %c0_31 = arith.constant 0 : index
      %44 = vector.load %arg7[%c0_30, %c0_31] : memref<128x1xf32, #tpu.memory_space<vmem>>, vector<128x1xf32>
      %c0_32 = arith.constant 0 : index
      %c0_33 = arith.constant 0 : index
      %45 = vector.load %arg8[%c0_32, %c0_33] : memref<128x1xf32, #tpu.memory_space<vmem>>, vector<128x1xf32>
      %46 = math.log %45 : vector<128x1xf32>
      %47 = arith.addf %44, %46 : vector<128x1xf32>
      %c0_34 = arith.constant 0 : index
      %c0_35 = arith.constant 0 : index
      %48 = vector.load %arg9[%c0_34, %c0_35] : memref<128x1xf32, #tpu.memory_space<vmem>>, vector<128x1xf32>
      %c0_36 = arith.constant 0 : index
      %c0_37 = arith.constant 0 : index
      %49 = vector.load %arg10[%c0_36, %c0_37] : memref<128x1xf32, #tpu.memory_space<vmem>>, vector<128x1xf32>
      %50 = arith.divf %48, %49 : vector<128x1xf32>
      %51 = arith.subf %47, %50 : vector<128x1xf32>
      %c0_38 = arith.constant 0 : index
      %c0_39 = arith.constant 0 : index
      %52 = vector.load %arg6[%c0_38, %c0_39] : memref<128x1xf32, #tpu.memory_space<vmem>>, vector<128x1xf32>
      tpu.vector_store %arg6[%c0_38, %c0_39], %51 {strides = array<i32>} : memref<128x1xf32, #tpu.memory_space<vmem>>, vector<128x1xf32>,
    } else {
    }
    return
  }
  func.func @transform_0(%arg0: i32, %arg1: i32) -> (i32, i32) {
    %c0_i32 = arith.constant 0 : i32
    %c0_i32_0 = arith.constant 0 : i32
    return %arg0, %c0_i32 : i32, i32
  }
  func.func @transform_1(%arg0: i32, %arg1: i32) -> (i32, i32) {
    %c0_i32 = arith.constant 0 : i32
    %c0_i32_0 = arith.constant 0 : i32
    return %c0_i32, %arg1 : i32, i32
  }
  func.func @transform_2(%arg0: i32, %arg1: i32) -> (i32, i32) {
    %c0_i32 = arith.constant 0 : i32
    %c0_i32_0 = arith.constant 0 : i32
    return %arg0, %c0_i32 : i32, i32
  }
  func.func @transform_3(%arg0: i32, %arg1: i32) -> (i32, i32) {
    %c0_i32 = arith.constant 0 : i32
    %c0_i32_0 = arith.constant 0 : i32
    return %c0_i32, %arg1 : i32, i32
  }
  func.func @transform_4(%arg0: i32, %arg1: i32) -> (i32, i32) {
    %c0_i32 = arith.constant 0 : i32
    %c0_i32_0 = arith.constant 0 : i32
    return %arg0, %c0_i32 : i32, i32
  }
}

</mosaic_0001>

<llo_original>
// kernel: supervised_contrastive_loss.2
$region0: #{supervised_contrastive_loss.2}
  #allocation0 [shape = 'u32[]', space=smem, size = 0x4, offset = 0x4, fixed_abs, tag = 'smem constant byte address 0x4 - core index']
  #allocation1 [shape = 'u32[144,128]{1,0:T(1,128)}', space=vmem, size = 0x12000, scoped, tag = 'internal scratch']
  %s0 = inlined_call_operand.vmem [shape: f32[256,32], index: 0, kind: input, shape index: {}]
  %s1 = inlined_call_operand.vmem [shape: f32[256,32], index: 1, kind: output, shape index: {}]
  %s2 = sld [smem:[#allocation0]]
  $region37: #{supervised_contrastive_loss.2} parent=0
    _
  %s4 = ssub.s32 1, %s2
  %s5 = scalar_select 0, %s4, %s2
  loop: start=0, step=1, limit=4
  $region2: #{supervised_contrastive_loss.2} parent=0 // loop_pre_header
    _
  $region3: #{supervised_contrastive_loss.2} parent=0 // loop_header
    %s7 = sphi 0, %s11
    %p8 = scmp.ge.s32.totalorder %s7, 4
    %s17 = sphi 0, %s19
    %s20 = sphi 0, %s17
    %s21 = sphi 0, %s20
    %s37 = sphi 0, %s21
    %s43 = sphi 0, %s45
    %s46 = sphi 0, %s43
    %s47 = sphi 0, %s46
    %s63 = sphi 0, %s47
  $region4: #{supervised_contrastive_loss.2} parent=0 // loop_header_branch
    %10 = sbr.rel (%p8) target = $region8
  $region5: #{supervised_contrastive_loss.2} parent=0 // loop_body
    %s12 = ssub.s32 %s7, 1
    %s13 = ssub.s32 %s7, 2
    %s14 = sadd.s32 %s7, 1
    %s15 = ssub.s32 %s7, %s14
    %p16 = scmp.eq.s32.totalorder %s15, 0
    %s18 = sadd.s32 %s17, 1
    %s19 = scalar_select %p16, %s17, %s18
    %p22 = pneg %p16
    %p23 = scmp.eq.s32.totalorder %s7, 1
    %p24 = por %p22, %p23
    %p25 = scmp.ne.s32.totalorder %s17, %s20
    %p26 = scmp.eq.s32.totalorder %s7, 0
    %p27 = por %p25, %p26
    %p28 = scmp.ne.s32.totalorder %s17, %s20
    %p29 = scmp.eq.s32.totalorder %s12, 1
    %p30 = por %p28, %p29
    %p31 = scmp.ne.s32.totalorder %s20, %s21
    %p32 = scmp.eq.s32.totalorder %s12, 0
    %p33 = por %p31, %p32
    %p34 = scmp.ne.s32.totalorder %s20, %s21
    %p35 = scmp.eq.s32.totalorder %s13, 1
    %p36 = por %p34, %p35
    %p38 = scmp.ne.s32.totalorder %s21, %s37
    %p39 = scmp.eq.s32.totalorder %s13, 0
    %p40 = por %p38, %p39
    %s41 = ssub.s32 %s7, %s14
    %p42 = scmp.eq.s32.totalorder %s41, 0
    %s44 = sadd.s32 %s43, 1
    %s45 = scalar_select %p42, %s43, %s44
    %p48 = pneg %p42
    %p49 = scmp.eq.s32.totalorder %s7, 1
    %p50 = por %p48, %p49
    %p51 = scmp.ne.s32.totalorder %s43, %s46
    %p52 = scmp.eq.s32.totalorder %s7, 0
    %p53 = por %p51, %p52
    %p54 = scmp.ne.s32.totalorder %s43, %s46
    %p55 = scmp.eq.s32.totalorder %s12, 1
    %p56 = por %p54, %p55
    %p57 = scmp.ne.s32.totalorder %s46, %s47
    %p58 = scmp.eq.s32.totalorder %s12, 0
    %p59 = por %p57, %p58
    %p60 = scmp.ne.s32.totalorder %s46, %s47
    %p61 = scmp.eq.s32.totalorder %s13, 1
    %p62 = por %p60, %p61
    %p64 = scmp.ne.s32.totalorder %s47, %s63
    %p65 = scmp.eq.s32.totalorder %s13, 0
    %p66 = por %p64, %p65
    %p67 = scmp.le.s32.totalorder 1, %s7
    %p68 = scmp.lt.s32.totalorder %s7, 3
    %p69 = pnand %p67, %p68
    %p70 = pneg %p69
    // Predicated region
    $region9: #{supervised_contrastive_loss.2} parent=5 // pred_check
      _
    $region10: #{supervised_contrastive_loss.2} parent=5 // pred_check_branch
      %72 = sbr.rel (%p69) target = $region12
    $region11: #{supervised_contrastive_loss.2} parent=5 // pred_region
      %s73 = ssub.s32 %s7, 1
    $region12: #{supervised_contrastive_loss.2} parent=5 // pred_fallthru
      _
    %p74 = scmp.lt.s32.totalorder %s7, 2
    // Predicated region
    $region13: #{supervised_contrastive_loss.2} parent=5 // pred_check
      %p75 = pneg %p74
    $region14: #{supervised_contrastive_loss.2} parent=5 // pred_check_branch
      %77 = sbr.rel (%p75) target = $region16
    $region15: #{supervised_contrastive_loss.2} parent=5 // pred_region
      // Predicated region
      $region17: #{supervised_contrastive_loss.2} parent=15 // pred_check
        %p78 = pneg %p27
      $region18: #{supervised_contrastive_loss.2} parent=15 // pred_check_branch
        %80 = sbr.rel (%p78) target = $region20
      $region19: #{supervised_contrastive_loss.2} parent=15 // pred_region
        %s81 = smul.u32 16, %s7
        %p82 = scmp.lt.s32.totalorder %s81, 31
        %s83 = scalar_select %p82, %s81, 31
        %s84 = smul.addr %s83, 8
        %s85 = scalar_lea.vmem %s0, %s84
        %s86 = smul.u32 16, %s7
      $region20: #{supervised_contrastive_loss.2} parent=15 // pred_fallthru
        _
    $region16: #{supervised_contrastive_loss.2} parent=5 // pred_fallthru
      _
    %p87 = scmp.le.s32.totalorder 1, %s7
    %p88 = scmp.lt.s32.totalorder %s7, 3
    %p89 = pnand %p87, %p88
    %p90 = pneg %p89
    // Predicated region
    $region21: #{supervised_contrastive_loss.2} parent=5 // pred_check
      _
    $region22: #{supervised_contrastive_loss.2} parent=5 // pred_check_branch
      %92 = sbr.rel (%p89) target = $region24
    $region23: #{supervised_contrastive_loss.2} parent=5 // pred_region
      %s93 = ssub.s32 %s7, 1
      %s94 = smul.u32 16, %s12
      %p95 = scmp.lt.s32.totalorder %s94, 31
      %s96 = scalar_select %p95, %s94, 31
      %s97 = smul.addr %s96, 8
      %s98 = scalar_lea.vmem %s0, %s97
      %p99 = pneg %p33
      %p100 = pneg %p30
      %p101 = pneg %p59
      %p102 = pneg %p56
      %s103 = smul.u32 16, %s12
      %p104 = scmp.lt.s32.totalorder %s103, 31
      %s105 = scalar_select %p104, %s103, 31
      %s106 = smul.addr %s105, 8
      %s107 = scalar_lea.vmem %s1, %s106
      %s108 = smul.u32 16, %s12
      %p109 = scmp.lt.s32.totalorder %s108, 31
      %s110 = scalar_select %p109, %s108, 31
      %s111 = smul.addr %s110, 8
      %s112 = scalar_lea.vmem %s0, %s111
      %s113 = smul.u32 16, %s12
      %s114 = smul.u32 16, %s12
      %p115 = scmp.lt.s32.totalorder %s114, 31
      %s116 = scalar_select %p115, %s114, 31
      %s117 = smul.addr %s116, 8
      %s118 = scalar_lea.vmem %s1, %s117
      %s119 = smul.u32 16, %s12
      %v120 = vld [vmem:[%s112] sm:$0xff]
      %v121 = vld [vmem:[%s112 + $0x8] sm:$0xff]
      %v122 = vld [vmem:[%s112 + $0x10] sm:$0xff]
      %v123 = vld [vmem:[%s112 + $0x18] sm:$0xff]
      %v124 = vld [vmem:[%s112 + $0x20] sm:$0xff]
      %v125 = vld [vmem:[%s112 + $0x28] sm:$0xff]
      %v126 = vld [vmem:[%s112 + $0x30] sm:$0xff]
      %v127 = vld [vmem:[%s112 + $0x38] sm:$0xff]
      %v128 = vld [vmem:[%s112 + $0x40] sm:$0xff]
      %v129 = vld [vmem:[%s112 + $0x48] sm:$0xff]
      %v130 = vld [vmem:[%s112 + $0x50] sm:$0xff]
      %v131 = vld [vmem:[%s112 + $0x58] sm:$0xff]
      %v132 = vld [vmem:[%s112 + $0x60] sm:$0xff]
      %v133 = vld [vmem:[%s112 + $0x68] sm:$0xff]
      %v134 = vld [vmem:[%s112 + $0x70] sm:$0xff]
      %v135 = vld [vmem:[%s112 + $0x78] sm:$0xff]
      %v136 = vmul.f32 %v120, %v120
      %v137 = vmul.f32 %v121, %v121
      %v138 = vmul.f32 %v122, %v122
      %v139 = vmul.f32 %v123, %v123
      %v140 = vmul.f32 %v124, %v124
      %v141 = vmul.f32 %v125, %v125
      %v142 = vmul.f32 %v126, %v126
      %v143 = vmul.f32 %v127, %v127
      %v144 = vmul.f32 %v128, %v128
      %v145 = vmul.f32 %v129, %v129
      %v146 = vmul.f32 %v130, %v130
      %v147 = vmul.f32 %v131, %v131
      %v148 = vmul.f32 %v132, %v132
      %v149 = vmul.f32 %v133, %v133
      %v150 = vmul.f32 %v134, %v134
      %v151 = vmul.f32 %v135, %v135
      %vm152 = vcmask 261120
      %v153 = vsel %vm152, %v136, 0.0
      %154 = vadd.xlane.f32.xlu0 %v153
      %v155 = vpop.xlane.xlu0 %154
      %v156 = vsel %vm152, %v137, 0.0
      %157 = vadd.xlane.f32.xlu0 %v156
      %v158 = vpop.xlane.xlu0 %157
      %v159 = vsel %vm152, %v138, 0.0
      %160 = vadd.xlane.f32.xlu0 %v159
      %v161 = vpop.xlane.xlu0 %160
      %v162 = vsel %vm152, %v139, 0.0
      %163 = vadd.xlane.f32.xlu0 %v162
      %v164 = vpop.xlane.xlu0 %163
      %v165 = vsel %vm152, %v140, 0.0
      %166 = vadd.xlane.f32.xlu0 %v165
      %v167 = vpop.xlane.xlu0 %166
      %v168 = vsel %vm152, %v141, 0.0
      %169 = vadd.xlane.f32.xlu0 %v168
      %v170 = vpop.xlane.xlu0 %169
      %v171 = vsel %vm152, %v142, 0.0
      %172 = vadd.xlane.f32.xlu0 %v171
      %v173 = vpop.xlane.xlu0 %172
      %v174 = vsel %vm152, %v143, 0.0
      %175 = vadd.xlane.f32.xlu0 %v174
      %v176 = vpop.xlane.xlu0 %175
      %v177 = vsel %vm152, %v144, 0.0
      %178 = vadd.xlane.f32.xlu0 %v177
      %v179 = vpop.xlane.xlu0 %178
      %v180 = vsel %vm152, %v145, 0.0
      %181 = vadd.xlane.f32.xlu0 %v180
      %v182 = vpop.xlane.xlu0 %181
      %v183 = vsel %vm152, %v146, 0.0
      %184 = vadd.xlane.f32.xlu0 %v183
      %v185 = vpop.xlane.xlu0 %184
      %v186 = vsel %vm152, %v147, 0.0
      %187 = vadd.xlane.f32.xlu0 %v186
      %v188 = vpop.xlane.xlu0 %187
      %v189 = vsel %vm152, %v148, 0.0
      %190 = vadd.xlane.f32.xlu0 %v189
      %v191 = vpop.xlane.xlu0 %190
      %v192 = vsel %vm152, %v149, 0.0
      %193 = vadd.xlane.f32.xlu0 %v192
      %v194 = vpop.xlane.xlu0 %193
      %v195 = vsel %vm152, %v150, 0.0
      %196 = vadd.xlane.f32.xlu0 %v195
      %v197 = vpop.xlane.xlu0 %196
      %v198 = vsel %vm152, %v151, 0.0
      %199 = vadd.xlane.f32.xlu0 %v198
      %v200 = vpop.xlane.xlu0 %199
      %v201 = vmax.f32 %v155, 1e-24
      %v202 = vmax.f32 %v158, 1e-24
      %v203 = vmax.f32 %v161, 1e-24
      %v204 = vmax.f32 %v164, 1e-24
      %v205 = vmax.f32 %v167, 1e-24
      %v206 = vmax.f32 %v170, 1e-24
      %v207 = vmax.f32 %v173, 1e-24
      %v208 = vmax.f32 %v176, 1e-24
      %v209 = vmax.f32 %v179, 1e-24
      %v210 = vmax.f32 %v182, 1e-24
      %v211 = vmax.f32 %v185, 1e-24
      %v212 = vmax.f32 %v188, 1e-24
      %v213 = vmax.f32 %v191, 1e-24
      %v214 = vmax.f32 %v194, 1e-24
      %v215 = vmax.f32 %v197, 1e-24
      %v216 = vmax.f32 %v200, 1e-24
      %v217 = vrsqrt.pop %v201
      %v218 = vrsqrt.pop %v202
      %v219 = vrsqrt.pop %v203
      %v220 = vrsqrt.pop %v204
      %v221 = vrsqrt.pop %v205
      %v222 = vrsqrt.pop %v206
      %v223 = vrsqrt.pop %v207
      %v224 = vrsqrt.pop %v208
      %v225 = vrsqrt.pop %v209
      %v226 = vrsqrt.pop %v210
      %v227 = vrsqrt.pop %v211
      %v228 = vrsqrt.pop %v212
      %v229 = vrsqrt.pop %v213
      %v230 = vrsqrt.pop %v214
      %v231 = vrsqrt.pop %v215
      %v232 = vrsqrt.pop %v216
      %v233 = vmul.f32 %v217, 3.7796447
      %v234 = vmul.f32 %v218, 3.7796447
      %v235 = vmul.f32 %v219, 3.7796447
      %v236 = vmul.f32 %v220, 3.7796447
      %v237 = vmul.f32 %v221, 3.7796447
      %v238 = vmul.f32 %v222, 3.7796447
      %v239 = vmul.f32 %v223, 3.7796447
      %v240 = vmul.f32 %v224, 3.7796447
      %v241 = vmul.f32 %v225, 3.7796447
      %v242 = vmul.f32 %v226, 3.7796447
      %v243 = vmul.f32 %v227, 3.7796447
      %v244 = vmul.f32 %v228, 3.7796447
      %v245 = vmul.f32 %v229, 3.7796447
      %v246 = vmul.f32 %v230, 3.7796447
      %v247 = vmul.f32 %v231, 3.7796447
      %v248 = vmul.f32 %v232, 3.7796447
      %v249 = vmul.f32 %v120, %v233
      %v250 = vmul.f32 %v121, %v234
      %v251 = vmul.f32 %v122, %v235
      %v252 = vmul.f32 %v123, %v236
      %v253 = vmul.f32 %v124, %v237
      %v254 = vmul.f32 %v125, %v238
      %v255 = vmul.f32 %v126, %v239
      %v256 = vmul.f32 %v127, %v240
      %v257 = vmul.f32 %v128, %v241
      %v258 = vmul.f32 %v129, %v242
      %v259 = vmul.f32 %v130, %v243
      %v260 = vmul.f32 %v131, %v244
      %v261 = vmul.f32 %v132, %v245
      %v262 = vmul.f32 %v133, %v246
      %v263 = vmul.f32 %v134, %v247
      %v264 = vmul.f32 %v135, %v248
      %265 = vst.msk [vmem:[%s118] sm:$0xff] %vm152, %v249
      %266 = vst.msk [vmem:[%s118 + $0x8] sm:$0xff] %vm152, %v250
      %267 = vst.msk [vmem:[%s118 + $0x10] sm:$0xff] %vm152, %v251
      %268 = vst.msk [vmem:[%s118 + $0x18] sm:$0xff] %vm152, %v252
      %269 = vst.msk [vmem:[%s118 + $0x20] sm:$0xff] %vm152, %v253
      %270 = vst.msk [vmem:[%s118 + $0x28] sm:$0xff] %vm152, %v254
      %271 = vst.msk [vmem:[%s118 + $0x30] sm:$0xff] %vm152, %v255
      %272 = vst.msk [vmem:[%s118 + $0x38] sm:$0xff] %vm152, %v256
      %273 = vst.msk [vmem:[%s118 + $0x40] sm:$0xff] %vm152, %v257
      %274 = vst.msk [vmem:[%s118 + $0x48] sm:$0xff] %vm152, %v258
      %275 = vst.msk [vmem:[%s118 + $0x50] sm:$0xff] %vm152, %v259
      %276 = vst.msk [vmem:[%s118 + $0x58] sm:$0xff] %vm152, %v260
      %277 = vst.msk [vmem:[%s118 + $0x60] sm:$0xff] %vm152, %v261
      %278 = vst.msk [vmem:[%s118 + $0x68] sm:$0xff] %vm152, %v262
      %279 = vst.msk [vmem:[%s118 + $0x70] sm:$0xff] %vm152, %v263
      %280 = vst.msk [vmem:[%s118 + $0x78] sm:$0xff] %vm152, %v264
      %s281 = smul.u32 16, %s12
      %p282 = scmp.lt.s32.totalorder %s281, 31
      %s283 = scalar_select %p282, %s281, 31
      %s284 = smul.addr %s283, 8
      %s285 = scalar_lea.vmem %s1, %s284
      // Predicated region
      $region25: #{supervised_contrastive_loss.2} parent=23 // pred_check
        %p286 = pneg %p56
      $region26: #{supervised_contrastive_loss.2} parent=23 // pred_check_branch
        %288 = sbr.rel (%p286) target = $region28
      $region27: #{supervised_contrastive_loss.2} parent=23 // pred_region
        %s289 = smul.u32 16, %s12
      $region28: #{supervised_contrastive_loss.2} parent=23 // pred_fallthru
        _
    $region24: #{supervised_contrastive_loss.2} parent=5 // pred_fallthru
      _
    %p290 = scmp.le.s32.totalorder 2, %s7
    // Predicated region
    $region29: #{supervised_contrastive_loss.2} parent=5 // pred_check
      %p291 = pneg %p290
    $region30: #{supervised_contrastive_loss.2} parent=5 // pred_check_branch
      %293 = sbr.rel (%p291) target = $region32
    $region31: #{supervised_contrastive_loss.2} parent=5 // pred_region
      %s294 = ssub.s32 %s7, 2
      // Predicated region
      $region33: #{supervised_contrastive_loss.2} parent=31 // pred_check
        %p295 = pneg %p62
      $region34: #{supervised_contrastive_loss.2} parent=31 // pred_check_branch
        %297 = sbr.rel (%p295) target = $region36
      $region35: #{supervised_contrastive_loss.2} parent=31 // pred_region
        %s298 = smul.u32 16, %s13
        %p299 = scmp.lt.s32.totalorder %s298, 31
        %s300 = scalar_select %p299, %s298, 31
        %s301 = smul.addr %s300, 8
        %s302 = scalar_lea.vmem %s1, %s301
      $region36: #{supervised_contrastive_loss.2} parent=31 // pred_fallthru
        _
    $region32: #{supervised_contrastive_loss.2} parent=5 // pred_fallthru
      _
  $region6: #{supervised_contrastive_loss.2} parent=0 // loop_footer
    %s11 = sadd.s32 1, %s7
  $region7: #{supervised_contrastive_loss.2} parent=0 // loop_footer_branch
    %6 = sbr.rel target = $region3
  $region8: #{supervised_contrastive_loss.2} parent=0 // loop_exit
    _

// kernel: supervised_contrastive_loss.3
$region0: #{supervised_contrastive_loss.3}
  #allocation0 [shape = 'u32[]', space=smem, size = 0x4, offset = 0x4, fixed_abs, tag = 'smem constant byte address 0x4 - core index']
  #allocation1 [shape = 'u32[144,128]{1,0:T(1,128)}', space=vmem, size = 0x12000, scoped, tag = 'internal scratch']
  #allocation2 [shape = 'f32[128,1]{1,0:T(8,128)}', space=vmem, size = 0x10000, scoped, tag = 'scratch operand']
  #allocation3 [shape = 'f32[128,1]{1,0:T(8,128)}', space=vmem, size = 0x10000, scoped, tag = 'scratch operand']
  #allocation4 [shape = 'f32[128,1]{1,0:T(8,128)}', space=vmem, size = 0x10000, scoped, tag = 'scratch operand']
  #allocation5 [shape = 'f32[128,1]{1,0:T(8,128)}', space=vmem, size = 0x10000, scoped, tag = 'scratch operand']
  %s0 = inlined_call_operand.vmem [shape: f32[256,32], index: 0, kind: input, shape index: {}]
  %s1 = inlined_call_operand.vmem [shape: f32[32,256], index: 1, kind: input, shape index: {}]
  %s2 = inlined_call_operand.vmem [shape: s32[256,1], index: 2, kind: input, shape index: {}]
  %s3 = inlined_call_operand.vmem [shape: s32[1,256], index: 3, kind: input, shape index: {}]
  %s4 = inlined_call_operand.vmem [shape: f32[256,1], index: 4, kind: output, shape index: {}]
  %s5 = sld [smem:[#allocation0]]
  $region95: #{supervised_contrastive_loss.3} parent=0
    _
  %s7 = ssub.s32 1, %s5
  %s8 = scalar_select 0, %s7, %s5
  $region1: #{supervised_contrastive_loss.3} parent=0
    #allocation6 [shape = 'u8[32768]{0}', space=vmem, size = 0x8000, scoped, tag = 'input window, operand 1']
    loop: start=0, step=1, limit=6
    $region2: #{supervised_contrastive_loss.3} parent=1 // loop_pre_header
      _
    $region3: #{supervised_contrastive_loss.3} parent=1 // loop_header
      %s10 = sphi 0, %s14
      %p11 = scmp.ge.s32.totalorder %s10, 6
      %s17 = sphi 0, %s29
      %s18 = sphi 0, %s25
      %s19 = sphi 0, %s17
      %s20 = sphi 0, %s18
      %s21 = sphi 0, %s19
      %s22 = sphi 0, %s20
      %s32 = sphi 0, %s34
      %s35 = sphi 0, %s32
      %s36 = sphi 0, %s35
      %s52 = sphi 0, %s36
      %s58 = sphi 0, %s60
      %s61 = sphi 0, %s58
      %s62 = sphi 0, %s61
      %s78 = sphi 0, %s62
      %s84 = sphi 0, %s86
      %s87 = sphi 0, %s84
      %s88 = sphi 0, %s87
      %s104 = sphi 0, %s88
      %s110 = sphi 0, %s112
      %s113 = sphi 0, %s110
      %s114 = sphi 0, %s113
      %s130 = sphi 0, %s114
      %s136 = sphi 0, %s138
      %s139 = sphi 0, %s136
      %s140 = sphi 0, %s139
      %s156 = sphi 0, %s140
    $region4: #{supervised_contrastive_loss.3} parent=1 // loop_header_branch
      %13 = sbr.rel (%p11) target = $region8
    $region5: #{supervised_contrastive_loss.3} parent=1 // loop_body
      %s15 = ssub.s32 %s10, 1
      %s16 = ssub.s32 %s10, 2
      %s23 = sadd.s32 1, %s18
      %p24 = scmp.ge.s32.totalorder %s23, 2
      %s25 = scalar_select %p24, 0, %s23
      %s26 = sadd.s32 1, %s17
      %s27 = scalar_select %p24, %s26, %s17
      %p28 = scmp.ge.s32.totalorder %s27, 2
      %s29 = scalar_select %p28, 0, %s27
      %s30 = ssub.s32 %s17, %s29
      %p31 = scmp.eq.s32.totalorder %s30, 0
      %s33 = sadd.s32 %s32, 1
      %s34 = scalar_select %p31, %s32, %s33
      %p37 = pneg %p31
      %p38 = scmp.eq.s32.totalorder %s10, 3
      %p39 = por %p37, %p38
      %p40 = scmp.ne.s32.totalorder %s32, %s35
      %p41 = scmp.eq.s32.totalorder %s10, 0
      %p42 = por %p40, %p41
      %p43 = scmp.ne.s32.totalorder %s32, %s35
      %p44 = scmp.eq.s32.totalorder %s15, 3
      %p45 = por %p43, %p44
      %p46 = scmp.ne.s32.totalorder %s35, %s36
      %p47 = scmp.eq.s32.totalorder %s15, 0
      %p48 = por %p46, %p47
      %p49 = scmp.ne.s32.totalorder %s35, %s36
      %p50 = scmp.eq.s32.totalorder %s16, 3
      %p51 = por %p49, %p50
      %p53 = scmp.ne.s32.totalorder %s36, %s52
      %p54 = scmp.eq.s32.totalorder %s16, 0
      %p55 = por %p53, %p54
      %s56 = ssub.s32 %s18, %s25
      %p57 = scmp.eq.s32.totalorder %s56, 0
      %s59 = sadd.s32 %s58, 1
      %s60 = scalar_select %p57, %s58, %s59
      %p63 = pneg %p57
      %p64 = scmp.eq.s32.totalorder %s10, 3
      %p65 = por %p63, %p64
      %p66 = scmp.ne.s32.totalorder %s58, %s61
      %p67 = scmp.eq.s32.totalorder %s10, 0
      %p68 = por %p66, %p67
      %p69 = scmp.ne.s32.totalorder %s58, %s61
      %p70 = scmp.eq.s32.totalorder %s15, 3
      %p71 = por %p69, %p70
      %p72 = scmp.ne.s32.totalorder %s61, %s62
      %p73 = scmp.eq.s32.totalorder %s15, 0
      %p74 = por %p72, %p73
      %p75 = scmp.ne.s32.totalorder %s61, %s62
      %p76 = scmp.eq.s32.totalorder %s16, 3
      %p77 = por %p75, %p76
      %p79 = scmp.ne.s32.totalorder %s62, %s78
      %p80 = scmp.eq.s32.totalorder %s16, 0
      %p81 = por %p79, %p80
      %s82 = ssub.s32 %s17, %s29
      %p83 = scmp.eq.s32.totalorder %s82, 0
      %s85 = sadd.s32 %s84, 1
      %s86 = scalar_select %p83, %s84, %s85
      %p89 = pneg %p83
      %p90 = scmp.eq.s32.totalorder %s10, 3
      %p91 = por %p89, %p90
      %p92 = scmp.ne.s32.totalorder %s84, %s87
      %p93 = scmp.eq.s32.totalorder %s10, 0
      %p94 = por %p92, %p93
      %p95 = scmp.ne.s32.totalorder %s84, %s87
      %p96 = scmp.eq.s32.totalorder %s15, 3
      %p97 = por %p95, %p96
      %p98 = scmp.ne.s32.totalorder %s87, %s88
      %p99 = scmp.eq.s32.totalorder %s15, 0
      %p100 = por %p98, %p99
      %p101 = scmp.ne.s32.totalorder %s87, %s88
      %p102 = scmp.eq.s32.totalorder %s16, 3
      %p103 = por %p101, %p102
      %p105 = scmp.ne.s32.totalorder %s88, %s104
      %p106 = scmp.eq.s32.totalorder %s16, 0
      %p107 = por %p105, %p106
      %s108 = ssub.s32 %s18, %s25
      %p109 = scmp.eq.s32.totalorder %s108, 0
      %s111 = sadd.s32 %s110, 1
      %s112 = scalar_select %p109, %s110, %s111
      %p115 = pneg %p109
      %p116 = scmp.eq.s32.totalorder %s10, 3
      %p117 = por %p115, %p116
      %p118 = scmp.ne.s32.totalorder %s110, %s113
      %p119 = scmp.eq.s32.totalorder %s10, 0
      %p120 = por %p118, %p119
      %p121 = scmp.ne.s32.totalorder %s110, %s113
      %p122 = scmp.eq.s32.totalorder %s15, 3
      %p123 = por %p121, %p122
      %p124 = scmp.ne.s32.totalorder %s113, %s114
      %p125 = scmp.eq.s32.totalorder %s15, 0
      %p126 = por %p124, %p125
      %p127 = scmp.ne.s32.totalorder %s113, %s114
      %p128 = scmp.eq.s32.totalorder %s16, 3
      %p129 = por %p127, %p128
      %p131 = scmp.ne.s32.totalorder %s114, %s130
      %p132 = scmp.eq.s32.totalorder %s16, 0
      %p133 = por %p131, %p132
      %s134 = ssub.s32 %s17, %s29
      %p135 = scmp.eq.s32.totalorder %s134, 0
      %s137 = sadd.s32 %s136, 1
      %s138 = scalar_select %p135, %s136, %s137
      %p141 = pneg %p135
      %p142 = scmp.eq.s32.totalorder %s10, 3
      %p143 = por %p141, %p142
      %p144 = scmp.ne.s32.totalorder %s136, %s139
      %p145 = scmp.eq.s32.totalorder %s10, 0
      %p146 = por %p144, %p145
      %p147 = scmp.ne.s32.totalorder %s136, %s139
      %p148 = scmp.eq.s32.totalorder %s15, 3
      %p149 = por %p147, %p148
      %p150 = scmp.ne.s32.totalorder %s139, %s140
      %p151 = scmp.eq.s32.totalorder %s15, 0
      %p152 = por %p150, %p151
      %p153 = scmp.ne.s32.totalorder %s139, %s140
      %p154 = scmp.eq.s32.totalorder %s16, 3
      %p155 = por %p153, %p154
      %p157 = scmp.ne.s32.totalorder %s140, %s156
      %p158 = scmp.eq.s32.totalorder %s16, 0
      %p159 = por %p157, %p158
      %p160 = scmp.le.s32.totalorder 1, %s10
      %p161 = scmp.lt.s32.totalorder %s10, 5
      %p162 = pnand %p160, %p161
      %p163 = pneg %p162
      // Predicated region
      $region9: #{supervised_contrastive_loss.3} parent=5 // pred_check
        _
      $region10: #{supervised_contrastive_loss.3} parent=5 // pred_check_branch
        %165 = sbr.rel (%p162) target = $region12
      $region11: #{supervised_contrastive_loss.3} parent=5 // pred_region
        %s166 = ssub.s32 %s10, 1
      $region12: #{supervised_contrastive_loss.3} parent=5 // pred_fallthru
        _
      %p167 = scmp.lt.s32.totalorder %s10, 4
      // Predicated region
      $region13: #{supervised_contrastive_loss.3} parent=5 // pred_check
        %p168 = pneg %p167
      $region14: #{supervised_contrastive_loss.3} parent=5 // pred_check_branch
        %170 = sbr.rel (%p168) target = $region16
      $region15: #{supervised_contrastive_loss.3} parent=5 // pred_region
        // Predicated region
        $region17: #{supervised_contrastive_loss.3} parent=15 // pred_check
          %p171 = pneg %p42
        $region18: #{supervised_contrastive_loss.3} parent=15 // pred_check_branch
          %173 = sbr.rel (%p171) target = $region20
        $region19: #{supervised_contrastive_loss.3} parent=15 // pred_region
          %s174 = smul.u32 16, %s17
          %p175 = scmp.lt.s32.totalorder %s174, 31
          %s176 = scalar_select %p175, %s174, 31
          %s177 = smul.addr %s176, 8
          %s178 = scalar_lea.vmem %s0, %s177
          %s179 = smul.u32 16, %s17
        $region20: #{supervised_contrastive_loss.3} parent=15 // pred_fallthru
          _
        // Predicated region
        $region21: #{supervised_contrastive_loss.3} parent=15 // pred_check
          %p180 = pneg %p68
        $region22: #{supervised_contrastive_loss.3} parent=15 // pred_check_branch
          %182 = sbr.rel (%p180) target = $region24
        $region23: #{supervised_contrastive_loss.3} parent=15 // pred_region
          %s183 = sand.u32 %s58, 1
          %s184 = sand.u32 %s58, 1
          %s185 = smul.addr %s184, 32
          %s186 = scalar_lea.vmem [#allocation6], %s185
          %s187 = smul.addr %s18, 8
          %s188 = scalar_lea.vmem %s1, %s187
          // Predicated region
          $region25: #{supervised_contrastive_loss.3} parent=23 // pred_check
            _
          $region26: #{supervised_contrastive_loss.3} parent=23 // pred_check_branch
            %190 = sbr.rel (0) target = $region28
          $region27: #{supervised_contrastive_loss.3} parent=23 // pred_region
            // Predicated region
            $region29: #{supervised_contrastive_loss.3} parent=27 // pred_check
              _
            $region30: #{supervised_contrastive_loss.3} parent=27 // pred_check_branch
              %192 = sbr.rel (0) target = $region32
            $region31: #{supervised_contrastive_loss.3} parent=27 // pred_region
              // Predicated region
              $region44: #{supervised_contrastive_loss.3} parent=31 // pred_check
                _
              $region45: #{supervised_contrastive_loss.3} parent=31 // pred_check_branch
                %214 = sbr.rel (0) target = $region47
              $region46: #{supervised_contrastive_loss.3} parent=31 // pred_region
                loop: start=0, step=1, limit=1
                $region48: #{supervised_contrastive_loss.3} parent=46 // loop_pre_header
                  _
                $region49: #{supervised_contrastive_loss.3} parent=46 // loop_header
                  %s216 = sphi 0, %s220
                  %p217 = scmp.ge.s32.totalorder %s216, 1
                  %s221 = sphi %s188, %s188
                  %s222 = sphi %s186, %s186
                $region50: #{supervised_contrastive_loss.3} parent=46 // loop_header_branch
                  %219 = sbr.rel (%p217) target = $region54
                $region51: #{supervised_contrastive_loss.3} parent=46 // loop_body
                  %v223 = vld [vmem:[%s221] sm:$0xff]
                  %224 = vst [vmem:[%s222] sm:$0xff] %v223
                  %v225 = vld [vmem:[%s221 + $0x10] sm:$0xff]
                  %226 = vst [vmem:[%s222 + $0x8] sm:$0xff] %v225
                  %v227 = vld [vmem:[%s221 + $0x20] sm:$0xff]
                  %228 = vst [vmem:[%s222 + $0x10] sm:$0xff] %v227
                  %v229 = vld [vmem:[%s221 + $0x30] sm:$0xff]
                  %230 = vst [vmem:[%s222 + $0x18] sm:$0xff] %v229
                $region52: #{supervised_contrastive_loss.3} parent=46 // loop_footer
                  %s220 = sadd.s32 1, %s216
                $region53: #{supervised_contrastive_loss.3} parent=46 // loop_footer_branch
                  %215 = sbr.rel target = $region49
                $region54: #{supervised_contrastive_loss.3} parent=46 // loop_exit
                  _
              $region47: #{supervised_contrastive_loss.3} parent=31 // pred_fallthru
                _
              // Predicated region
              $region55: #{supervised_contrastive_loss.3} parent=31 // pred_check
                _
              $region56: #{supervised_contrastive_loss.3} parent=31 // pred_check_branch
                %232 = sbr.rel target = $region58
              $region57: #{supervised_contrastive_loss.3} parent=31 // pred_region
                _
              $region58: #{supervised_contrastive_loss.3} parent=31 // pred_fallthru
                _
            $region32: #{supervised_contrastive_loss.3} parent=27 // pred_fallthru
              _
            // Predicated region
            $region33: #{supervised_contrastive_loss.3} parent=27 // pred_check
              _
            $region34: #{supervised_contrastive_loss.3} parent=27 // pred_check_branch
              %194 = sbr.rel target = $region36
            $region35: #{supervised_contrastive_loss.3} parent=27 // pred_region
              %s196 = ssub.s32 256, 1
              loop: start=0, step=1, limit=1
              $region37: #{supervised_contrastive_loss.3} parent=35 // loop_pre_header
                _
              $region38: #{supervised_contrastive_loss.3} parent=35 // loop_header
                %s198 = sphi 0, %s202
                %p199 = scmp.ge.s32.totalorder %s198, 1
                %s203 = sphi %s188, %s188
                %s204 = sphi %s186, %s186
              $region39: #{supervised_contrastive_loss.3} parent=35 // loop_header_branch
                %201 = sbr.rel (%p199) target = $region43
              $region40: #{supervised_contrastive_loss.3} parent=35 // loop_body
                %v205 = vld [vmem:[%s203] sm:%s196]
                %206 = vst [vmem:[%s204] sm:%s196] %v205
                %v207 = vld [vmem:[%s203 + $0x10] sm:%s196]
                %208 = vst [vmem:[%s204 + $0x8] sm:%s196] %v207
                %v209 = vld [vmem:[%s203 + $0x20] sm:%s196]
                %210 = vst [vmem:[%s204 + $0x10] sm:%s196] %v209
                %v211 = vld [vmem:[%s203 + $0x30] sm:%s196]
                %212 = vst [vmem:[%s204 + $0x18] sm:%s196] %v211
              $region41: #{supervised_contrastive_loss.3} parent=35 // loop_footer
                %s202 = sadd.s32 1, %s198
              $region42: #{supervised_contrastive_loss.3} parent=35 // loop_footer_branch
                %197 = sbr.rel target = $region38
              $region43: #{supervised_contrastive_loss.3} parent=35 // loop_exit
                _
            $region36: #{supervised_contrastive_loss.3} parent=27 // pred_fallthru
              _
          $region28: #{supervised_contrastive_loss.3} parent=23 // pred_fallthru
            _
          %233 = vnop
        $region24: #{supervised_contrastive_loss.3} parent=15 // pred_fallthru
          _
        // Predicated region
        $region59: #{supervised_contrastive_loss.3} parent=15 // pred_check
          %p234 = pneg %p94
        $region60: #{supervised_contrastive_loss.3} parent=15 // pred_check_branch
          %236 = sbr.rel (%p234) target = $region62
        $region61: #{supervised_contrastive_loss.3} parent=15 // pred_region
          %s237 = smul.u32 16, %s17
          %p238 = scmp.lt.s32.totalorder %s237, 31
          %s239 = scalar_select %p238, %s237, 31
          %s240 = smul.addr %s239, 8
          %s241 = scalar_lea.vmem %s2, %s240
          %s242 = smul.u32 16, %s17
        $region62: #{supervised_contrastive_loss.3} parent=15 // pred_fallthru
          _
        // Predicated region
        $region63: #{supervised_contrastive_loss.3} parent=15 // pred_check
          %p243 = pneg %p120
        $region64: #{supervised_contrastive_loss.3} parent=15 // pred_check_branch
          %245 = sbr.rel (%p243) target = $region66
        $region65: #{supervised_contrastive_loss.3} parent=15 // pred_region
          %p246 = scmp.lt.s32.totalorder %s18, 1
          %s247 = scalar_select %p246, %s18, 1
          %s248 = scalar_lea.vmem %s3, %s247
        $region66: #{supervised_contrastive_loss.3} parent=15 // pred_fallthru
          _
      $region16: #{supervised_contrastive_loss.3} parent=5 // pred_fallthru
        _
      %p249 = scmp.le.s32.totalorder 1, %s10
      %p250 = scmp.lt.s32.totalorder %s10, 5
      %p251 = pnand %p249, %p250
      %p252 = pneg %p251
      // Predicated region
      $region67: #{supervised_contrastive_loss.3} parent=5 // pred_check
        _
      $region68: #{supervised_contrastive_loss.3} parent=5 // pred_check_branch
        %254 = sbr.rel (%p251) target = $region70
      $region69: #{supervised_contrastive_loss.3} parent=5 // pred_region
        %s255 = ssub.s32 %s10, 1
        %s256 = sand.u32 %s61, 1
        %s257 = sand.u32 %s61, 1
        %s258 = smul.addr %s257, 32
        %s259 = scalar_lea.vmem [#allocation6], %s258
        // Predicated region
        $region71: #{supervised_contrastive_loss.3} parent=69 // pred_check
          %p260 = pneg %p74
        $region72: #{supervised_contrastive_loss.3} parent=69 // pred_check_branch
          %262 = sbr.rel (%p260) target = $region74
        $region73: #{supervised_contrastive_loss.3} parent=69 // pred_region
          _
        $region74: #{supervised_contrastive_loss.3} parent=69 // pred_fallthru
          _
        %s263 = smul.u32 16, %s19
        %p264 = scmp.lt.s32.totalorder %s263, 31
        %s265 = scalar_select %p264, %s263, 31
        %s266 = smul.addr %s265, 8
        %s267 = scalar_lea.vmem %s0, %s266
        %p268 = pneg %p48
        %p269 = pneg %p45
        %s270 = sand.u32 %s61, 1
        %s271 = sand.u32 %s61, 1
        %s272 = smul.addr %s271, 32
        %s273 = scalar_lea.vmem [#allocation6], %s272
        %p274 = pneg %p74
        %p275 = pneg %p71
        %s276 = smul.u32 16, %s19
        %p277 = scmp.lt.s32.totalorder %s276, 31
        %s278 = scalar_select %p277, %s276, 31
        %s279 = smul.addr %s278, 8
        %s280 = scalar_lea.vmem %s2, %s279
        %p281 = pneg %p100
        %p282 = pneg %p97
        %p283 = scmp.lt.s32.totalorder %s20, 1
        %s284 = scalar_select %p283, %s20, 1
        %s285 = scalar_lea.vmem %s3, %s284
        %p286 = pneg %p126
        %p287 = pneg %p123
        %p288 = pneg %p152
        %p289 = pneg %p149
        %s290 = smul.u32 16, %s19
        %p291 = scmp.lt.s32.totalorder %s290, 31
        %s292 = scalar_select %p291, %s290, 31
        %s293 = smul.addr %s292, 8
        %s294 = scalar_lea.vmem %s4, %s293
        %s295 = smul.u32 16, %s19
        %p296 = scmp.lt.s32.totalorder %s295, 31
        %s297 = scalar_select %p296, %s295, 31
        %s298 = smul.addr %s297, 8
        %s299 = scalar_lea.vmem %s0, %s298
        %s300 = smul.u32 16, %s19
        %s301 = smul.u32 16, %s19
        %p302 = scmp.lt.s32.totalorder %s301, 31
        %s303 = scalar_select %p302, %s301, 31
        %s304 = smul.addr %s303, 8
        %s305 = scalar_lea.vmem %s2, %s304
        %s306 = smul.u32 16, %s19
        %p307 = scmp.lt.s32.totalorder %s20, 1
        %s308 = scalar_select %p307, %s20, 1
        %s309 = scalar_lea.vmem %s3, %s308
        %s310 = smul.u32 16, %s19
        %p311 = scmp.lt.s32.totalorder %s310, 31
        %s312 = scalar_select %p311, %s310, 31
        %s313 = smul.addr %s312, 8
        %s314 = scalar_lea.vmem %s4, %s313
        %s315 = smul.u32 16, %s19
        %p316 = scmp.eq.s32.totalorder %s20, 0
        // Predicated region
        $region75: #{supervised_contrastive_loss.3} parent=69 // pred_check
          %p317 = pneg %p316
        $region76: #{supervised_contrastive_loss.3} parent=69 // pred_check_branch
          %319 = sbr.rel (%p317) target = $region78
        $region77: #{supervised_contrastive_loss.3} parent=69 // pred_region
          %vm320 = vcmask 7168
          %321 = vst.msk [vmem:[#allocation2] sm:$0xff] %vm320, -inf
          %322 = vst.msk [vmem:[#allocation2 + $0x8] sm:$0xff] %vm320, -inf
          %323 = vst.msk [vmem:[#allocation2 + $0x10] sm:$0xff] %vm320, -inf
          %324 = vst.msk [vmem:[#allocation2 + $0x18] sm:$0xff] %vm320, -inf
          %325 = vst.msk [vmem:[#allocation2 + $0x20] sm:$0xff] %vm320, -inf
          %326 = vst.msk [vmem:[#allocation2 + $0x28] sm:$0xff] %vm320, -inf
          %327 = vst.msk [vmem:[#allocation2 + $0x30] sm:$0xff] %vm320, -inf
          %328 = vst.msk [vmem:[#allocation2 + $0x38] sm:$0xff] %vm320, -inf
          %329 = vst.msk [vmem:[#allocation2 + $0x40] sm:$0xff] %vm320, -inf
          %330 = vst.msk [vmem:[#allocation2 + $0x48] sm:$0xff] %vm320, -inf
          %331 = vst.msk [vmem:[#allocation2 + $0x50] sm:$0xff] %vm320, -inf
          %332 = vst.msk [vmem:[#allocation2 + $0x58] sm:$0xff] %vm320, -inf
          %333 = vst.msk [vmem:[#allocation2 + $0x60] sm:$0xff] %vm320, -inf
          %334 = vst.msk [vmem:[#allocation2 + $0x68] sm:$0xff] %vm320, -inf
          %335 = vst.msk [vmem:[#allocation2 + $0x70] sm:$0xff] %vm320, -inf
          %336 = vst.msk [vmem:[#allocation2 + $0x78] sm:$0xff] %vm320, -inf
          %337 = vst.msk [vmem:[#allocation3] sm:$0xff] %vm320, 0.0
          %338 = vst.msk [vmem:[#allocation3 + $0x8] sm:$0xff] %vm320, 0.0
          %339 = vst.msk [vmem:[#allocation3 + $0x10] sm:$0xff] %vm320, 0.0
          %340 = vst.msk [vmem:[#allocation3 + $0x18] sm:$0xff] %vm320, 0.0
          %341 = vst.msk [vmem:[#allocation3 + $0x20] sm:$0xff] %vm320, 0.0
          %342 = vst.msk [vmem:[#allocation3 + $0x28] sm:$0xff] %vm320, 0.0
          %343 = vst.msk [vmem:[#allocation3 + $0x30] sm:$0xff] %vm320, 0.0
          %344 = vst.msk [vmem:[#allocation3 + $0x38] sm:$0xff] %vm320, 0.0
          %345 = vst.msk [vmem:[#allocation3 + $0x40] sm:$0xff] %vm320, 0.0
          %346 = vst.msk [vmem:[#allocation3 + $0x48] sm:$0xff] %vm320, 0.0
          %347 = vst.msk [vmem:[#allocation3 + $0x50] sm:$0xff] %vm320, 0.0
          %348 = vst.msk [vmem:[#allocation3 + $0x58] sm:$0xff] %vm320, 0.0
          %349 = vst.msk [vmem:[#allocation3 + $0x60] sm:$0xff] %vm320, 0.0
          %350 = vst.msk [vmem:[#allocation3 + $0x68] sm:$0xff] %vm320, 0.0
          %351 = vst.msk [vmem:[#allocation3 + $0x70] sm:$0xff] %vm320, 0.0
          %352 = vst.msk [vmem:[#allocation3 + $0x78] sm:$0xff] %vm320, 0.0
          %353 = vst.msk [vmem:[#allocation4] sm:$0xff] %vm320, 0.0
          %354 = vst.msk [vmem:[#allocation4 + $0x8] sm:$0xff] %vm320, 0.0
          %355 = vst.msk [vmem:[#allocation4 + $0x10] sm:$0xff] %vm320, 0.0
          %356 = vst.msk [vmem:[#allocation4 + $0x18] sm:$0xff] %vm320, 0.0
          %357 = vst.msk [vmem:[#allocation4 + $0x20] sm:$0xff] %vm320, 0.0
          %358 = vst.msk [vmem:[#allocation4 + $0x28] sm:$0xff] %vm320, 0.0
          %359 = vst.msk [vmem:[#allocation4 + $0x30] sm:$0xff] %vm320, 0.0
          %360 = vst.msk [vmem:[#allocation4 + $0x38] sm:$0xff] %vm320, 0.0
          %361 = vst.msk [vmem:[#allocation4 + $0x40] sm:$0xff] %vm320, 0.0
          %362 = vst.msk [vmem:[#allocation4 + $0x48] sm:$0xff] %vm320, 0.0
          %363 = vst.msk [vmem:[#allocation4 + $0x50] sm:$0xff] %vm320, 0.0
          %364 = vst.msk [vmem:[#allocation4 + $0x58] sm:$0xff] %vm320, 0.0
          %365 = vst.msk [vmem:[#allocation4 + $0x60] sm:$0xff] %vm320, 0.0
          %366 = vst.msk [vmem:[#allocation4 + $0x68] sm:$0xff] %vm320, 0.0
          %367 = vst.msk [vmem:[#allocation4 + $0x70] sm:$0xff] %vm320, 0.0
          %368 = vst.msk [vmem:[#allocation4 + $0x78] sm:$0xff] %vm320, 0.0
          %369 = vst.msk [vmem:[#allocation5] sm:$0xff] %vm320, 0.0
          %370 = vst.msk [vmem:[#allocation5 + $0x8] sm:$0xff] %vm320, 0.0
          %371 = vst.msk [vmem:[#allocation5 + $0x10] sm:$0xff] %vm320, 0.0
          %372 = vst.msk [vmem:[#allocation5 + $0x18] sm:$0xff] %vm320, 0.0
          %373 = vst.msk [vmem:[#allocation5 + $0x20] sm:$0xff] %vm320, 0.0
          %374 = vst.msk [vmem:[#allocation5 + $0x28] sm:$0xff] %vm320, 0.0
          %375 = vst.msk [vmem:[#allocation5 + $0x30] sm:$0xff] %vm320, 0.0
          %376 = vst.msk [vmem:[#allocation5 + $0x38] sm:$0xff] %vm320, 0.0
          %377 = vst.msk [vmem:[#allocation5 + $0x40] sm:$0xff] %vm320, 0.0
          %378 = vst.msk [vmem:[#allocation5 + $0x48] sm:$0xff] %vm320, 0.0
          %379 = vst.msk [vmem:[#allocation5 + $0x50] sm:$0xff] %vm320, 0.0
          %380 = vst.msk [vmem:[#allocation5 + $0x58] sm:$0xff] %vm320, 0.0
          %381 = vst.msk [vmem:[#allocation5 + $0x60] sm:$0xff] %vm320, 0.0
          %382 = vst.msk [vmem:[#allocation5 + $0x68] sm:$0xff] %vm320, 0.0
          %383 = vst.msk [vmem:[#allocation5 + $0x70] sm:$0xff] %vm320, 0.0
          %384 = vst.msk [vmem:[#allocation5 + $0x78] sm:$0xff] %vm320, 0.0
        $region78: #{supervised_contrastive_loss.3} parent=69 // pred_fallthru
          _
        %v385 = vld [vmem:[%s299] sm:$0xff]
        %v386 = vld [vmem:[%s299 + $0x8] sm:$0xff]
        %v387 = vld [vmem:[%s299 + $0x10] sm:$0xff]
        %v388 = vld [vmem:[%s299 + $0x18] sm:$0xff]
        %v389 = vld [vmem:[%s299 + $0x20] sm:$0xff]
        %v390 = vld [vmem:[%s299 + $0x28] sm:$0xff]
        %v391 = vld [vmem:[%s299 + $0x30] sm:$0xff]
        %v392 = vld [vmem:[%s299 + $0x38] sm:$0xff]
        %v393 = vld [vmem:[%s299 + $0x40] sm:$0xff]
        %v394 = vld [vmem:[%s299 + $0x48] sm:$0xff]
        %v395 = vld [vmem:[%s299 + $0x50] sm:$0xff]
        %v396 = vld [vmem:[%s299 + $0x58] sm:$0xff]
        %v397 = vld [vmem:[%s299 + $0x60] sm:$0xff]
        %v398 = vld [vmem:[%s299 + $0x68] sm:$0xff]
        %v399 = vld [vmem:[%s299 + $0x70] sm:$0xff]
        %v400 = vld [vmem:[%s299 + $0x78] sm:$0xff]
        %v401 = vld [vmem:[%s259] sm:$0xff]
        %v402 = vld [vmem:[%s259 + $0x8] sm:$0xff]
        %v403 = vld [vmem:[%s259 + $0x10] sm:$0xff]
        %v404 = vld [vmem:[%s259 + $0x18] sm:$0xff]
        %vm405 = vcmask 261120
        %v407 = vsel %vm405, %v385, 0
        %v410 = vsel %vm405, %v386, 0
        %v413 = vsel %vm405, %v387, 0
        %v416 = vsel %vm405, %v388, 0
        %v419 = vsel %vm405, %v389, 0
        %v422 = vsel %vm405, %v390, 0
        %v425 = vsel %vm405, %v391, 0
        %v428 = vsel %vm405, %v392, 0
        %v431 = vsel %vm405, %v393, 0
        %v434 = vsel %vm405, %v394, 0
        %v437 = vsel %vm405, %v395, 0
        %v440 = vsel %vm405, %v396, 0
        %v443 = vsel %vm405, %v397, 0
        %v446 = vsel %vm405, %v398, 0
        %v449 = vsel %vm405, %v399, 0
        %v452 = vsel %vm405, %v400, 0
        %454 = vmatprep.subr.mxu0 0.0
        %455 = vmatpush1.msra.mxu0 0.0
        %456 = vmatprep.subr.mxu0 0.0
        %457 = vmatpush1.msra.mxu0 0.0
        %458 = vmatprep.subr.mxu0 0.0
        %459 = vmatpush1.msra.mxu0 0.0
        %460 = vmatprep.subr.mxu0 0.0
        %461 = vmatpush1.msra.mxu0 0.0
        %462 = vmatprep.subr.mxu0 0.0
        %463 = vmatpush1.msra.mxu0 0.0
        %464 = vmatprep.subr.mxu0 0.0
        %465 = vmatpush1.msra.mxu0 0.0
        %466 = vmatprep.subr.mxu0 0.0
        %467 = vmatpush1.msra.mxu0 0.0
        %468 = vmatprep.subr.mxu0 0.0
        %469 = vmatpush1.msra.mxu0 0.0
        %470 = vmatprep.subr.mxu0 0.0
        %471 = vmatpush1.msra.mxu0 0.0
        %472 = vmatprep.subr.mxu0 0.0
        %473 = vmatpush1.msra.mxu0 0.0
        %474 = vmatprep.subr.mxu0 0.0
        %475 = vmatpush1.msra.mxu0 0.0
        %476 = vmatprep.subr.mxu0 0.0
        %477 = vmatpush1.msra.mxu0 0.0
        %478 = vmatprep.subr.mxu0 0.0
        %479 = vmatpush1.msra.mxu0 %v404
        %480 = vmatprep.subr.mxu0 0.0
        %481 = vmatpush1.msra.mxu0 %v403
        %482 = vmatprep.subr.mxu0 0.0
        %483 = vmatpush1.msra.mxu0 %v402
        %484 = vmatprep.subr.mxu0 0.0
        %485 = vmatpush1.msra.mxu0 %v401
        %486 = vmatprep.subr.mxu0 0.0
        %487 = vmatpush2.msra.mxu0 0.0
        %488 = vmatprep.subr.mxu0 0.0
        %489 = vmatpush2.msra.mxu0 0.0
        %490 = vmatprep.subr.mxu0 0.0
        %491 = vmatpush2.msra.mxu0 0.0
        %492 = vmatprep.subr.mxu0 0.0
        %493 = vmatpush2.msra.mxu0 0.0
        %494 = vmatprep.subr.mxu0 0.0
        %495 = vmatpush2.msra.mxu0 0.0
        %496 = vmatprep.subr.mxu0 0.0
        %497 = vmatpush2.msra.mxu0 0.0
        %498 = vmatprep.subr.mxu0 0.0
        %499 = vmatpush2.msra.mxu0 0.0
        %500 = vmatprep.subr.mxu0 0.0
        %501 = vmatpush2.msra.mxu0 0.0
        %502 = vmatprep.subr.mxu0 0.0
        %503 = vmatpush2.msra.mxu0 0.0
        %504 = vmatprep.subr.mxu0 0.0
        %505 = vmatpush2.msra.mxu0 0.0
        %506 = vmatprep.subr.mxu0 0.0
        %507 = vmatpush2.msra.mxu0 0.0
        %508 = vmatprep.subr.mxu0 0.0
        %509 = vmatpush2.msra.mxu0 0.0
        %510 = vmatprep.subr.mxu0 0.0
        %511 = vmatpush2.msra.mxu0 0.0
        %512 = vmatprep.subr.mxu0 0.0
        %513 = vmatpush2.msra.mxu0 0.0
        %514 = vmatprep.subr.mxu0 0.0
        %515 = vmatpush2.msra.mxu0 0.0
        %516 = vmatprep.subr.mxu0 0.0
        %517 = vmatpush2.msra.mxu0 0.0
        %518 = vmatprep.mubr.f32.mxu0 0.0
        %519 = vmatmul.mubr.f32.gmra.mxu0 %v407
        %v520 = vpop.f32.mrf.mxu0
        %v521 = vadd.f32 0.0, %v520
        %v522 = vpop.f32.mrf.mxu0
        %523 = vmatprep.mubr.f32.mxu0 0.0
        %524 = vmatmul.mubr.f32.gmra.mxu0 %v410
        %v525 = vpop.f32.mrf.mxu0
        %v526 = vadd.f32 0.0, %v525
        %v527 = vpop.f32.mrf.mxu0
        %528 = vmatprep.mubr.f32.mxu0 0.0
        %529 = vmatmul.mubr.f32.gmra.mxu0 %v413
        %v530 = vpop.f32.mrf.mxu0
        %v531 = vadd.f32 0.0, %v530
        %v532 = vpop.f32.mrf.mxu0
        %533 = vmatprep.mubr.f32.mxu0 0.0
        %534 = vmatmul.mubr.f32.gmra.mxu0 %v416
        %v535 = vpop.f32.mrf.mxu0
        %v536 = vadd.f32 0.0, %v535
        %v537 = vpop.f32.mrf.mxu0
        %538 = vmatprep.mubr.f32.mxu0 0.0
        %539 = vmatmul.mubr.f32.gmra.mxu0 %v419
        %v540 = vpop.f32.mrf.mxu0
        %v541 = vadd.f32 0.0, %v540
        %v542 = vpop.f32.mrf.mxu0
        %543 = vmatprep.mubr.f32.mxu0 0.0
        %544 = vmatmul.mubr.f32.gmra.mxu0 %v422
        %v545 = vpop.f32.mrf.mxu0
        %v546 = vadd.f32 0.0, %v545
        %v547 = vpop.f32.mrf.mxu0
        %548 = vmatprep.mubr.f32.mxu0 0.0
        %549 = vmatmul.mubr.f32.gmra.mxu0 %v425
        %v550 = vpop.f32.mrf.mxu0
        %v551 = vadd.f32 0.0, %v550
        %v552 = vpop.f32.mrf.mxu0
        %553 = vmatprep.mubr.f32.mxu0 0.0
        %554 = vmatmul.mubr.f32.gmra.mxu0 %v428
        %v555 = vpop.f32.mrf.mxu0
        %v556 = vadd.f32 0.0, %v555
        %v557 = vpop.f32.mrf.mxu0
        %558 = vmatprep.mubr.f32.mxu0 0.0
        %559 = vmatmul.mubr.f32.gmra.mxu0 %v431
        %v560 = vpop.f32.mrf.mxu0
        %v561 = vadd.f32 0.0, %v560
        %v562 = vpop.f32.mrf.mxu0
        %563 = vmatprep.mubr.f32.mxu0 0.0
        %564 = vmatmul.mubr.f32.gmra.mxu0 %v434
        %v565 = vpop.f32.mrf.mxu0
        %v566 = vadd.f32 0.0, %v565
        %v567 = vpop.f32.mrf.mxu0
        %568 = vmatprep.mubr.f32.mxu0 0.0
        %569 = vmatmul.mubr.f32.gmra.mxu0 %v437
        %v570 = vpop.f32.mrf.mxu0
        %v571 = vadd.f32 0.0, %v570
        %v572 = vpop.f32.mrf.mxu0
        %573 = vmatprep.mubr.f32.mxu0 0.0
        %574 = vmatmul.mubr.f32.gmra.mxu0 %v440
        %v575 = vpop.f32.mrf.mxu0
        %v576 = vadd.f32 0.0, %v575
        %v577 = vpop.f32.mrf.mxu0
        %578 = vmatprep.mubr.f32.mxu0 0.0
        %579 = vmatmul.mubr.f32.gmra.mxu0 %v443
        %v580 = vpop.f32.mrf.mxu0
        %v581 = vadd.f32 0.0, %v580
        %v582 = vpop.f32.mrf.mxu0
        %583 = vmatprep.mubr.f32.mxu0 0.0
        %584 = vmatmul.mubr.f32.gmra.mxu0 %v446
        %v585 = vpop.f32.mrf.mxu0
        %v586 = vadd.f32 0.0, %v585
        %v587 = vpop.f32.mrf.mxu0
        %588 = vmatprep.mubr.f32.mxu0 0.0
        %589 = vmatmul.mubr.f32.gmra.mxu0 %v449
        %v590 = vpop.f32.mrf.mxu0
        %v591 = vadd.f32 0.0, %v590
        %v592 = vpop.f32.mrf.mxu0
        %593 = vmatprep.mubr.f32.mxu0 0.0
        %594 = vmatmul.mubr.f32.gmra.mxu0 %v452
        %v595 = vpop.f32.mrf.mxu0
        %v596 = vadd.f32 0.0, %v595
        %v597 = vpop.f32.mrf.mxu0
        %598 = vdwg.mxu0
        %v599 = vld [vmem:[%s305] sm:$0xff]
        %v600 = vld [vmem:[%s305 + $0x8] sm:$0xff]
        %v601 = vld [vmem:[%s305 + $0x10] sm:$0xff]
        %v602 = vld [vmem:[%s305 + $0x18] sm:$0xff]
        %v603 = vld [vmem:[%s305 + $0x20] sm:$0xff]
        %v604 = vld [vmem:[%s305 + $0x28] sm:$0xff]
        %v605 = vld [vmem:[%s305 + $0x30] sm:$0xff]
        %v606 = vld [vmem:[%s305 + $0x38] sm:$0xff]
        %v607 = vld [vmem:[%s305 + $0x40] sm:$0xff]
        %v608 = vld [vmem:[%s305 + $0x48] sm:$0xff]
        %v609 = vld [vmem:[%s305 + $0x50] sm:$0xff]
        %v610 = vld [vmem:[%s305 + $0x58] sm:$0xff]
        %v611 = vld [vmem:[%s305 + $0x60] sm:$0xff]
        %v612 = vld [vmem:[%s305 + $0x68] sm:$0xff]
        %v613 = vld [vmem:[%s305 + $0x70] sm:$0xff]
        %v614 = vld [vmem:[%s305 + $0x78] sm:$0xff]
        %v615 = vld [vmem:[%s309] sm:$0x1]
        %616 = vset.pattern.permute.xlu0 0
        %617 = vperm.xlu0 %616, %v599
        %v618 = vpop.permute.xlu0 %617
        %619 = vset.pattern.permute.xlu0 0
        %620 = vperm.xlu0 %619, %v600
        %v621 = vpop.permute.xlu0 %620
        %622 = vset.pattern.permute.xlu0 0
        %623 = vperm.xlu0 %622, %v601
        %v624 = vpop.permute.xlu0 %623
        %625 = vset.pattern.permute.xlu0 0
        %626 = vperm.xlu0 %625, %v602
        %v627 = vpop.permute.xlu0 %626
        %628 = vset.pattern.permute.xlu0 0
        %629 = vperm.xlu0 %628, %v603
        %v630 = vpop.permute.xlu0 %629
        %631 = vset.pattern.permute.xlu0 0
        %632 = vperm.xlu0 %631, %v604
        %v633 = vpop.permute.xlu0 %632
        %634 = vset.pattern.permute.xlu0 0
        %635 = vperm.xlu0 %634, %v605
        %v636 = vpop.permute.xlu0 %635
        %637 = vset.pattern.permute.xlu0 0
        %638 = vperm.xlu0 %637, %v606
        %v639 = vpop.permute.xlu0 %638
        %640 = vset.pattern.permute.xlu0 0
        %641 = vperm.xlu0 %640, %v607
        %v642 = vpop.permute.xlu0 %641
        %643 = vset.pattern.permute.xlu0 0
        %644 = vperm.xlu0 %643, %v608
        %v645 = vpop.permute.xlu0 %644
        %646 = vset.pattern.permute.xlu0 0
        %647 = vperm.xlu0 %646, %v609
        %v648 = vpop.permute.xlu0 %647
        %649 = vset.pattern.permute.xlu0 0
        %650 = vperm.xlu0 %649, %v610
        %v651 = vpop.permute.xlu0 %650
        %652 = vset.pattern.permute.xlu0 0
        %653 = vperm.xlu0 %652, %v611
        %v654 = vpop.permute.xlu0 %653
        %655 = vset.pattern.permute.xlu0 0
        %656 = vperm.xlu0 %655, %v612
        %v657 = vpop.permute.xlu0 %656
        %658 = vset.pattern.permute.xlu0 0
        %659 = vperm.xlu0 %658, %v613
        %v660 = vpop.permute.xlu0 %659
        %661 = vset.pattern.permute.xlu0 0
        %662 = vperm.xlu0 %661, %v614
        %v663 = vpop.permute.xlu0 %662
        %v664 = vlaneseq
        %v665 = vshrl.u32 %v664, 7
        %v666 = vsub.s32 0, %v665
        %v667 = vrot.slane %v615, %v666
        %vm668 = vcmp.eq.s32.totalorder %v618, %v667
        %vm669 = vcmp.eq.s32.totalorder %v621, %v667
        %vm670 = vcmp.eq.s32.totalorder %v624, %v667
        %vm671 = vcmp.eq.s32.totalorder %v627, %v667
        %vm672 = vcmp.eq.s32.totalorder %v630, %v667
        %vm673 = vcmp.eq.s32.totalorder %v633, %v667
        %vm674 = vcmp.eq.s32.totalorder %v636, %v667
        %vm675 = vcmp.eq.s32.totalorder %v639, %v667
        %vm676 = vcmp.eq.s32.totalorder %v642, %v667
        %vm677 = vcmp.eq.s32.totalorder %v645, %v667
        %vm678 = vcmp.eq.s32.totalorder %v648, %v667
        %vm679 = vcmp.eq.s32.totalorder %v651, %v667
        %vm680 = vcmp.eq.s32.totalorder %v654, %v667
        %vm681 = vcmp.eq.s32.totalorder %v657, %v667
        %vm682 = vcmp.eq.s32.totalorder %v660, %v667
        %vm683 = vcmp.eq.s32.totalorder %v663, %v667
        %v684 = vld [vmem:[#allocation2] sm:$0xff]
        %v685 = vld [vmem:[#allocation2 + $0x8] sm:$0xff]
        %v686 = vld [vmem:[#allocation2 + $0x10] sm:$0xff]
        %v687 = vld [vmem:[#allocation2 + $0x18] sm:$0xff]
        %v688 = vld [vmem:[#allocation2 + $0x20] sm:$0xff]
        %v689 = vld [vmem:[#allocation2 + $0x28] sm:$0xff]
        %v690 = vld [vmem:[#allocation2 + $0x30] sm:$0xff]
        %v691 = vld [vmem:[#allocation2 + $0x38] sm:$0xff]
        %v692 = vld [vmem:[#allocation2 + $0x40] sm:$0xff]
        %v693 = vld [vmem:[#allocation2 + $0x48] sm:$0xff]
        %v694 = vld [vmem:[#allocation2 + $0x50] sm:$0xff]
        %v695 = vld [vmem:[#allocation2 + $0x58] sm:$0xff]
        %v696 = vld [vmem:[#allocation2 + $0x60] sm:$0xff]
        %v697 = vld [vmem:[#allocation2 + $0x68] sm:$0xff]
        %v698 = vld [vmem:[#allocation2 + $0x70] sm:$0xff]
        %v699 = vld [vmem:[#allocation2 + $0x78] sm:$0xff]
        %700 = vmax.xlane.f32.xlu0 %v521
        %v701 = vpop.xlane.xlu0 %700
        %702 = vmax.xlane.f32.xlu0 %v526
        %v703 = vpop.xlane.xlu0 %702
        %704 = vmax.xlane.f32.xlu0 %v531
        %v705 = vpop.xlane.xlu0 %704
        %706 = vmax.xlane.f32.xlu0 %v536
        %v707 = vpop.xlane.xlu0 %706
        %708 = vmax.xlane.f32.xlu0 %v541
        %v709 = vpop.xlane.xlu0 %708
        %710 = vmax.xlane.f32.xlu0 %v546
        %v711 = vpop.xlane.xlu0 %710
        %712 = vmax.xlane.f32.xlu0 %v551
        %v713 = vpop.xlane.xlu0 %712
        %714 = vmax.xlane.f32.xlu0 %v556
        %v715 = vpop.xlane.xlu0 %714
        %716 = vmax.xlane.f32.xlu0 %v561
        %v717 = vpop.xlane.xlu0 %716
        %718 = vmax.xlane.f32.xlu0 %v566
        %v719 = vpop.xlane.xlu0 %718
        %720 = vmax.xlane.f32.xlu0 %v571
        %v721 = vpop.xlane.xlu0 %720
        %722 = vmax.xlane.f32.xlu0 %v576
        %v723 = vpop.xlane.xlu0 %722
        %724 = vmax.xlane.f32.xlu0 %v581
        %v725 = vpop.xlane.xlu0 %724
        %726 = vmax.xlane.f32.xlu0 %v586
        %v727 = vpop.xlane.xlu0 %726
        %728 = vmax.xlane.f32.xlu0 %v591
        %v729 = vpop.xlane.xlu0 %728
        %730 = vmax.xlane.f32.xlu0 %v596
        %v731 = vpop.xlane.xlu0 %730
        %v732 = vmax.f32 %v684, %v701
        %v733 = vmax.f32 %v685, %v703
        %v734 = vmax.f32 %v686, %v705
        %v735 = vmax.f32 %v687, %v707
        %v736 = vmax.f32 %v688, %v709
        %v737 = vmax.f32 %v689, %v711
        %v738 = vmax.f32 %v690, %v713
        %v739 = vmax.f32 %v691, %v715
        %v740 = vmax.f32 %v692, %v717
        %v741 = vmax.f32 %v693, %v719
        %v742 = vmax.f32 %v694, %v721
        %v743 = vmax.f32 %v695, %v723
        %v744 = vmax.f32 %v696, %v725
        %v745 = vmax.f32 %v697, %v727
        %v746 = vmax.f32 %v698, %v729
        %v747 = vmax.f32 %v699, %v731
        %v748 = vsub.f32 %v684, %v732
        %v749 = vsub.f32 %v685, %v733
        %v750 = vsub.f32 %v686, %v734
        %v751 = vsub.f32 %v687, %v735
        %v752 = vsub.f32 %v688, %v736
        %v753 = vsub.f32 %v689, %v737
        %v754 = vsub.f32 %v690, %v738
        %v755 = vsub.f32 %v691, %v739
        %v756 = vsub.f32 %v692, %v740
        %v757 = vsub.f32 %v693, %v741
        %v758 = vsub.f32 %v694, %v742
        %v759 = vsub.f32 %v695, %v743
        %v760 = vsub.f32 %v696, %v744
        %v761 = vsub.f32 %v697, %v745
        %v762 = vsub.f32 %v698, %v746
        %v763 = vsub.f32 %v699, %v747
        %v764 = vmul.f32 %v748, 1.442695
        %v765 = vpow.pop %v764
        %v766 = vmul.f32 %v749, 1.442695
        %v767 = vpow.pop %v766
        %v768 = vmul.f32 %v750, 1.442695
        %v769 = vpow.pop %v768
        %v770 = vmul.f32 %v751, 1.442695
        %v771 = vpow.pop %v770
        %v772 = vmul.f32 %v752, 1.442695
        %v773 = vpow.pop %v772
        %v774 = vmul.f32 %v753, 1.442695
        %v775 = vpow.pop %v774
        %v776 = vmul.f32 %v754, 1.442695
        %v777 = vpow.pop %v776
        %v778 = vmul.f32 %v755, 1.442695
        %v779 = vpow.pop %v778
        %v780 = vmul.f32 %v756, 1.442695
        %v781 = vpow.pop %v780
        %v782 = vmul.f32 %v757, 1.442695
        %v783 = vpow.pop %v782
        %v784 = vmul.f32 %v758, 1.442695
        %v785 = vpow.pop %v784
        %v786 = vmul.f32 %v759, 1.442695
        %v787 = vpow.pop %v786
        %v788 = vmul.f32 %v760, 1.442695
        %v789 = vpow.pop %v788
        %v790 = vmul.f32 %v761, 1.442695
        %v791 = vpow.pop %v790
        %v792 = vmul.f32 %v762, 1.442695
        %v793 = vpow.pop %v792
        %v794 = vmul.f32 %v763, 1.442695
        %v795 = vpow.pop %v794
        %v796 = vld [vmem:[#allocation3] sm:$0xff]
        %v797 = vld [vmem:[#allocation3 + $0x8] sm:$0xff]
        %v798 = vld [vmem:[#allocation3 + $0x10] sm:$0xff]
        %v799 = vld [vmem:[#allocation3 + $0x18] sm:$0xff]
        %v800 = vld [vmem:[#allocation3 + $0x20] sm:$0xff]
        %v801 = vld [vmem:[#allocation3 + $0x28] sm:$0xff]
        %v802 = vld [vmem:[#allocation3 + $0x30] sm:$0xff]
        %v803 = vld [vmem:[#allocation3 + $0x38] sm:$0xff]
        %v804 = vld [vmem:[#allocation3 + $0x40] sm:$0xff]
        %v805 = vld [vmem:[#allocation3 + $0x48] sm:$0xff]
        %v806 = vld [vmem:[#allocation3 + $0x50] sm:$0xff]
        %v807 = vld [vmem:[#allocation3 + $0x58] sm:$0xff]
        %v808 = vld [vmem:[#allocation3 + $0x60] sm:$0xff]
        %v809 = vld [vmem:[#allocation3 + $0x68] sm:$0xff]
        %v810 = vld [vmem:[#allocation3 + $0x70] sm:$0xff]
        %v811 = vld [vmem:[#allocation3 + $0x78] sm:$0xff]
        %v812 = vmul.f32 %v796, %v765
        %v813 = vmul.f32 %v797, %v767
        %v814 = vmul.f32 %v798, %v769
        %v815 = vmul.f32 %v799, %v771
        %v816 = vmul.f32 %v800, %v773
        %v817 = vmul.f32 %v801, %v775
        %v818 = vmul.f32 %v802, %v777
        %v819 = vmul.f32 %v803, %v779
        %v820 = vmul.f32 %v804, %v781
        %v821 = vmul.f32 %v805, %v783
        %v822 = vmul.f32 %v806, %v785
        %v823 = vmul.f32 %v807, %v787
        %v824 = vmul.f32 %v808, %v789
        %v825 = vmul.f32 %v809, %v791
        %v826 = vmul.f32 %v810, %v793
        %v827 = vmul.f32 %v811, %v795
        %829 = vset.pattern.permute.xlu0 0
        %830 = vperm.xlu0 %829, %v732
        %v831 = vpop.permute.xlu0 %830
        %834 = vset.pattern.permute.xlu0 0
        %835 = vperm.xlu0 %834, %v733
        %v836 = vpop.permute.xlu0 %835
        %839 = vset.pattern.permute.xlu0 0
        %840 = vperm.xlu0 %839, %v734
        %v841 = vpop.permute.xlu0 %840
        %844 = vset.pattern.permute.xlu0 0
        %845 = vperm.xlu0 %844, %v735
        %v846 = vpop.permute.xlu0 %845
        %849 = vset.pattern.permute.xlu0 0
        %850 = vperm.xlu0 %849, %v736
        %v851 = vpop.permute.xlu0 %850
        %854 = vset.pattern.permute.xlu0 0
        %855 = vperm.xlu0 %854, %v737
        %v856 = vpop.permute.xlu0 %855
        %859 = vset.pattern.permute.xlu0 0
        %860 = vperm.xlu0 %859, %v738
        %v861 = vpop.permute.xlu0 %860
        %864 = vset.pattern.permute.xlu0 0
        %865 = vperm.xlu0 %864, %v739
        %v866 = vpop.permute.xlu0 %865
        %869 = vset.pattern.permute.xlu0 0
        %870 = vperm.xlu0 %869, %v740
        %v871 = vpop.permute.xlu0 %870
        %874 = vset.pattern.permute.xlu0 0
        %875 = vperm.xlu0 %874, %v741
        %v876 = vpop.permute.xlu0 %875
        %879 = vset.pattern.permute.xlu0 0
        %880 = vperm.xlu0 %879, %v742
        %v881 = vpop.permute.xlu0 %880
        %884 = vset.pattern.permute.xlu0 0
        %885 = vperm.xlu0 %884, %v743
        %v886 = vpop.permute.xlu0 %885
        %889 = vset.pattern.permute.xlu0 0
        %890 = vperm.xlu0 %889, %v744
        %v891 = vpop.permute.xlu0 %890
        %894 = vset.pattern.permute.xlu0 0
        %895 = vperm.xlu0 %894, %v745
        %v896 = vpop.permute.xlu0 %895
        %899 = vset.pattern.permute.xlu0 0
        %900 = vperm.xlu0 %899, %v746
        %v901 = vpop.permute.xlu0 %900
        %904 = vset.pattern.permute.xlu0 0
        %905 = vperm.xlu0 %904, %v747
        %v906 = vpop.permute.xlu0 %905
        %v908 = vsub.f32 %v521, %v831
        %v909 = vsub.f32 %v526, %v836
        %v910 = vsub.f32 %v531, %v841
        %v911 = vsub.f32 %v536, %v846
        %v912 = vsub.f32 %v541, %v851
        %v913 = vsub.f32 %v546, %v856
        %v914 = vsub.f32 %v551, %v861
        %v915 = vsub.f32 %v556, %v866
        %v916 = vsub.f32 %v561, %v871
        %v917 = vsub.f32 %v566, %v876
        %v918 = vsub.f32 %v571, %v881
        %v919 = vsub.f32 %v576, %v886
        %v920 = vsub.f32 %v581, %v891
        %v921 = vsub.f32 %v586, %v896
        %v922 = vsub.f32 %v591, %v901
        %v923 = vsub.f32 %v596, %v906
        %v924 = vmul.f32 %v908, 1.442695
        %v925 = vpow.pop %v924
        %v926 = vmul.f32 %v909, 1.442695
        %v927 = vpow.pop %v926
        %v928 = vmul.f32 %v910, 1.442695
        %v929 = vpow.pop %v928
        %v930 = vmul.f32 %v911, 1.442695
        %v931 = vpow.pop %v930
        %v932 = vmul.f32 %v912, 1.442695
        %v933 = vpow.pop %v932
        %v934 = vmul.f32 %v913, 1.442695
        %v935 = vpow.pop %v934
        %v936 = vmul.f32 %v914, 1.442695
        %v937 = vpow.pop %v936
        %v938 = vmul.f32 %v915, 1.442695
        %v939 = vpow.pop %v938
        %v940 = vmul.f32 %v916, 1.442695
        %v941 = vpow.pop %v940
        %v942 = vmul.f32 %v917, 1.442695
        %v943 = vpow.pop %v942
        %v944 = vmul.f32 %v918, 1.442695
        %v945 = vpow.pop %v944
        %v946 = vmul.f32 %v919, 1.442695
        %v947 = vpow.pop %v946
        %v948 = vmul.f32 %v920, 1.442695
        %v949 = vpow.pop %v948
        %v950 = vmul.f32 %v921, 1.442695
        %v951 = vpow.pop %v950
        %v952 = vmul.f32 %v922, 1.442695
        %v953 = vpow.pop %v952
        %v954 = vmul.f32 %v923, 1.442695
        %v955 = vpow.pop %v954
        %956 = vadd.xlane.f32.xlu0 %v925
        %v957 = vpop.xlane.xlu0 %956
        %958 = vadd.xlane.f32.xlu0 %v927
        %v959 = vpop.xlane.xlu0 %958
        %960 = vadd.xlane.f32.xlu0 %v929
        %v961 = vpop.xlane.xlu0 %960
        %962 = vadd.xlane.f32.xlu0 %v931
        %v963 = vpop.xlane.xlu0 %962
        %964 = vadd.xlane.f32.xlu0 %v933
        %v965 = vpop.xlane.xlu0 %964
        %966 = vadd.xlane.f32.xlu0 %v935
        %v967 = vpop.xlane.xlu0 %966
        %968 = vadd.xlane.f32.xlu0 %v937
        %v969 = vpop.xlane.xlu0 %968
        %970 = vadd.xlane.f32.xlu0 %v939
        %v971 = vpop.xlane.xlu0 %970
        %972 = vadd.xlane.f32.xlu0 %v941
        %v973 = vpop.xlane.xlu0 %972
        %974 = vadd.xlane.f32.xlu0 %v943
        %v975 = vpop.xlane.xlu0 %974
        %976 = vadd.xlane.f32.xlu0 %v945
        %v977 = vpop.xlane.xlu0 %976
        %978 = vadd.xlane.f32.xlu0 %v947
        %v979 = vpop.xlane.xlu0 %978
        %980 = vadd.xlane.f32.xlu0 %v949
        %v981 = vpop.xlane.xlu0 %980
        %982 = vadd.xlane.f32.xlu0 %v951
        %v983 = vpop.xlane.xlu0 %982
        %984 = vadd.xlane.f32.xlu0 %v953
        %v985 = vpop.xlane.xlu0 %984
        %986 = vadd.xlane.f32.xlu0 %v955
        %v987 = vpop.xlane.xlu0 %986
        %v988 = vadd.f32 %v812, %v957
        %v989 = vadd.f32 %v813, %v959
        %v990 = vadd.f32 %v814, %v961
        %v991 = vadd.f32 %v815, %v963
        %v992 = vadd.f32 %v816, %v965
        %v993 = vadd.f32 %v817, %v967
        %v994 = vadd.f32 %v818, %v969
        %v995 = vadd.f32 %v819, %v971
        %v996 = vadd.f32 %v820, %v973
        %v997 = vadd.f32 %v821, %v975
        %v998 = vadd.f32 %v822, %v977
        %v999 = vadd.f32 %v823, %v979
        %v1000 = vadd.f32 %v824, %v981
        %v1001 = vadd.f32 %v825, %v983
        %v1002 = vadd.f32 %v826, %v985
        %v1003 = vadd.f32 %v827, %v987
        %vm1004 = vcmask 7168
        %1005 = vst.msk [vmem:[#allocation3] sm:$0xff] %vm1004, %v988
        %1006 = vst.msk [vmem:[#allocation3 + $0x8] sm:$0xff] %vm1004, %v989
        %1007 = vst.msk [vmem:[#allocation3 + $0x10] sm:$0xff] %vm1004, %v990
        %1008 = vst.msk [vmem:[#allocation3 + $0x18] sm:$0xff] %vm1004, %v991
        %1009 = vst.msk [vmem:[#allocation3 + $0x20] sm:$0xff] %vm1004, %v992
        %1010 = vst.msk [vmem:[#allocation3 + $0x28] sm:$0xff] %vm1004, %v993
        %1011 = vst.msk [vmem:[#allocation3 + $0x30] sm:$0xff] %vm1004, %v994
        %1012 = vst.msk [vmem:[#allocation3 + $0x38] sm:$0xff] %vm1004, %v995
        %1013 = vst.msk [vmem:[#allocation3 + $0x40] sm:$0xff] %vm1004, %v996
        %1014 = vst.msk [vmem:[#allocation3 + $0x48] sm:$0xff] %vm1004, %v997
        %1015 = vst.msk [vmem:[#allocation3 + $0x50] sm:$0xff] %vm1004, %v998
        %1016 = vst.msk [vmem:[#allocation3 + $0x58] sm:$0xff] %vm1004, %v999
        %1017 = vst.msk [vmem:[#allocation3 + $0x60] sm:$0xff] %vm1004, %v1000
        %1018 = vst.msk [vmem:[#allocation3 + $0x68] sm:$0xff] %vm1004, %v1001
        %1019 = vst.msk [vmem:[#allocation3 + $0x70] sm:$0xff] %vm1004, %v1002
        %1020 = vst.msk [vmem:[#allocation3 + $0x78] sm:$0xff] %vm1004, %v1003
        %1021 = vst.msk [vmem:[#allocation2] sm:$0xff] %vm1004, %v732
        %1022 = vst.msk [vmem:[#allocation2 + $0x8] sm:$0xff] %vm1004, %v733
        %1023 = vst.msk [vmem:[#allocation2 + $0x10] sm:$0xff] %vm1004, %v734
        %1024 = vst.msk [vmem:[#allocation2 + $0x18] sm:$0xff] %vm1004, %v735
        %1025 = vst.msk [vmem:[#allocation2 + $0x20] sm:$0xff] %vm1004, %v736
        %1026 = vst.msk [vmem:[#allocation2 + $0x28] sm:$0xff] %vm1004, %v737
        %1027 = vst.msk [vmem:[#allocation2 + $0x30] sm:$0xff] %vm1004, %v738
        %1028 = vst.msk [vmem:[#allocation2 + $0x38] sm:$0xff] %vm1004, %v739
        %1029 = vst.msk [vmem:[#allocation2 + $0x40] sm:$0xff] %vm1004, %v740
        %1030 = vst.msk [vmem:[#allocation2 + $0x48] sm:$0xff] %vm1004, %v741
        %1031 = vst.msk [vmem:[#allocation2 + $0x50] sm:$0xff] %vm1004, %v742
        %1032 = vst.msk [vmem:[#allocation2 + $0x58] sm:$0xff] %vm1004, %v743
        %1033 = vst.msk [vmem:[#allocation2 + $0x60] sm:$0xff] %vm1004, %v744
        %1034 = vst.msk [vmem:[#allocation2 + $0x68] sm:$0xff] %vm1004, %v745
        %1035 = vst.msk [vmem:[#allocation2 + $0x70] sm:$0xff] %vm1004, %v746
        %1036 = vst.msk [vmem:[#allocation2 + $0x78] sm:$0xff] %vm1004, %v747
        %v1037 = vld [vmem:[#allocation4] sm:$0xff]
        %v1038 = vld [vmem:[#allocation4 + $0x8] sm:$0xff]
        %v1039 = vld [vmem:[#allocation4 + $0x10] sm:$0xff]
        %v1040 = vld [vmem:[#allocation4 + $0x18] sm:$0xff]
        %v1041 = vld [vmem:[#allocation4 + $0x20] sm:$0xff]
        %v1042 = vld [vmem:[#allocation4 + $0x28] sm:$0xff]
        %v1043 = vld [vmem:[#allocation4 + $0x30] sm:$0xff]
        %v1044 = vld [vmem:[#allocation4 + $0x38] sm:$0xff]
        %v1045 = vld [vmem:[#allocation4 + $0x40] sm:$0xff]
        %v1046 = vld [vmem:[#allocation4 + $0x48] sm:$0xff]
        %v1047 = vld [vmem:[#allocation4 + $0x50] sm:$0xff]
        %v1048 = vld [vmem:[#allocation4 + $0x58] sm:$0xff]
        %v1049 = vld [vmem:[#allocation4 + $0x60] sm:$0xff]
        %v1050 = vld [vmem:[#allocation4 + $0x68] sm:$0xff]
        %v1051 = vld [vmem:[#allocation4 + $0x70] sm:$0xff]
        %v1052 = vld [vmem:[#allocation4 + $0x78] sm:$0xff]
        %v1053 = vsel %vm668, %v521, 0.0
        %v1054 = vsel %vm669, %v526, 0.0
        %v1055 = vsel %vm670, %v531, 0.0
        %v1056 = vsel %vm671, %v536, 0.0
        %v1057 = vsel %vm672, %v541, 0.0
        %v1058 = vsel %vm673, %v546, 0.0
        %v1059 = vsel %vm674, %v551, 0.0
        %v1060 = vsel %vm675, %v556, 0.0
        %v1061 = vsel %vm676, %v561, 0.0
        %v1062 = vsel %vm677, %v566, 0.0
        %v1063 = vsel %vm678, %v571, 0.0
        %v1064 = vsel %vm679, %v576, 0.0
        %v1065 = vsel %vm680, %v581, 0.0
        %v1066 = vsel %vm681, %v586, 0.0
        %v1067 = vsel %vm682, %v591, 0.0
        %v1068 = vsel %vm683, %v596, 0.0
        %1069 = vadd.xlane.f32.xlu0 %v1053
        %v1070 = vpop.xlane.xlu0 %1069
        %1071 = vadd.xlane.f32.xlu0 %v1054
        %v1072 = vpop.xlane.xlu0 %1071
        %1073 = vadd.xlane.f32.xlu0 %v1055
        %v1074 = vpop.xlane.xlu0 %1073
        %1075 = vadd.xlane.f32.xlu0 %v1056
        %v1076 = vpop.xlane.xlu0 %1075
        %1077 = vadd.xlane.f32.xlu0 %v1057
        %v1078 = vpop.xlane.xlu0 %1077
        %1079 = vadd.xlane.f32.xlu0 %v1058
        %v1080 = vpop.xlane.xlu0 %1079
        %1081 = vadd.xlane.f32.xlu0 %v1059
        %v1082 = vpop.xlane.xlu0 %1081
        %1083 = vadd.xlane.f32.xlu0 %v1060
        %v1084 = vpop.xlane.xlu0 %1083
        %1085 = vadd.xlane.f32.xlu0 %v1061
        %v1086 = vpop.xlane.xlu0 %1085
        %1087 = vadd.xlane.f32.xlu0 %v1062
        %v1088 = vpop.xlane.xlu0 %1087
        %1089 = vadd.xlane.f32.xlu0 %v1063
        %v1090 = vpop.xlane.xlu0 %1089
        %1091 = vadd.xlane.f32.xlu0 %v1064
        %v1092 = vpop.xlane.xlu0 %1091
        %1093 = vadd.xlane.f32.xlu0 %v1065
        %v1094 = vpop.xlane.xlu0 %1093
        %1095 = vadd.xlane.f32.xlu0 %v1066
        %v1096 = vpop.xlane.xlu0 %1095
        %1097 = vadd.xlane.f32.xlu0 %v1067
        %v1098 = vpop.xlane.xlu0 %1097
        %1099 = vadd.xlane.f32.xlu0 %v1068
        %v1100 = vpop.xlane.xlu0 %1099
        %v1101 = vadd.f32 %v1037, %v1070
        %v1102 = vadd.f32 %v1038, %v1072
        %v1103 = vadd.f32 %v1039, %v1074
        %v1104 = vadd.f32 %v1040, %v1076
        %v1105 = vadd.f32 %v1041, %v1078
        %v1106 = vadd.f32 %v1042, %v1080
        %v1107 = vadd.f32 %v1043, %v1082
        %v1108 = vadd.f32 %v1044, %v1084
        %v1109 = vadd.f32 %v1045, %v1086
        %v1110 = vadd.f32 %v1046, %v1088
        %v1111 = vadd.f32 %v1047, %v1090
        %v1112 = vadd.f32 %v1048, %v1092
        %v1113 = vadd.f32 %v1049, %v1094
        %v1114 = vadd.f32 %v1050, %v1096
        %v1115 = vadd.f32 %v1051, %v1098
        %v1116 = vadd.f32 %v1052, %v1100
        %1117 = vst.msk [vmem:[#allocation4] sm:$0xff] %vm1004, %v1101
        %1118 = vst.msk [vmem:[#allocation4 + $0x8] sm:$0xff] %vm1004, %v1102
        %1119 = vst.msk [vmem:[#allocation4 + $0x10] sm:$0xff] %vm1004, %v1103
        %1120 = vst.msk [vmem:[#allocation4 + $0x18] sm:$0xff] %vm1004, %v1104
        %1121 = vst.msk [vmem:[#allocation4 + $0x20] sm:$0xff] %vm1004, %v1105
        %1122 = vst.msk [vmem:[#allocation4 + $0x28] sm:$0xff] %vm1004, %v1106
        %1123 = vst.msk [vmem:[#allocation4 + $0x30] sm:$0xff] %vm1004, %v1107
        %1124 = vst.msk [vmem:[#allocation4 + $0x38] sm:$0xff] %vm1004, %v1108
        %1125 = vst.msk [vmem:[#allocation4 + $0x40] sm:$0xff] %vm1004, %v1109
        %1126 = vst.msk [vmem:[#allocation4 + $0x48] sm:$0xff] %vm1004, %v1110
        %1127 = vst.msk [vmem:[#allocation4 + $0x50] sm:$0xff] %vm1004, %v1111
        %1128 = vst.msk [vmem:[#allocation4 + $0x58] sm:$0xff] %vm1004, %v1112
        %1129 = vst.msk [vmem:[#allocation4 + $0x60] sm:$0xff] %vm1004, %v1113
        %1130 = vst.msk [vmem:[#allocation4 + $0x68] sm:$0xff] %vm1004, %v1114
        %1131 = vst.msk [vmem:[#allocation4 + $0x70] sm:$0xff] %vm1004, %v1115
        %1132 = vst.msk [vmem:[#allocation4 + $0x78] sm:$0xff] %vm1004, %v1116
        %v1133 = vld [vmem:[#allocation5] sm:$0xff]
        %v1134 = vld [vmem:[#allocation5 + $0x8] sm:$0xff]
        %v1135 = vld [vmem:[#allocation5 + $0x10] sm:$0xff]
        %v1136 = vld [vmem:[#allocation5 + $0x18] sm:$0xff]
        %v1137 = vld [vmem:[#allocation5 + $0x20] sm:$0xff]
        %v1138 = vld [vmem:[#allocation5 + $0x28] sm:$0xff]
        %v1139 = vld [vmem:[#allocation5 + $0x30] sm:$0xff]
        %v1140 = vld [vmem:[#allocation5 + $0x38] sm:$0xff]
        %v1141 = vld [vmem:[#allocation5 + $0x40] sm:$0xff]
        %v1142 = vld [vmem:[#allocation5 + $0x48] sm:$0xff]
        %v1143 = vld [vmem:[#allocation5 + $0x50] sm:$0xff]
        %v1144 = vld [vmem:[#allocation5 + $0x58] sm:$0xff]
        %v1145 = vld [vmem:[#allocation5 + $0x60] sm:$0xff]
        %v1146 = vld [vmem:[#allocation5 + $0x68] sm:$0xff]
        %v1147 = vld [vmem:[#allocation5 + $0x70] sm:$0xff]
        %v1148 = vld [vmem:[#allocation5 + $0x78] sm:$0xff]
        %v1149 = vsel %vm668, 1, 0
        %v1150 = vsel %vm669, 1, 0
        %v1151 = vsel %vm670, 1, 0
        %v1152 = vsel %vm671, 1, 0
        %v1153 = vsel %vm672, 1, 0
        %v1154 = vsel %vm673, 1, 0
        %v1155 = vsel %vm674, 1, 0
        %v1156 = vsel %vm675, 1, 0
        %v1157 = vsel %vm676, 1, 0
        %v1158 = vsel %vm677, 1, 0
        %v1159 = vsel %vm678, 1, 0
        %v1160 = vsel %vm679, 1, 0
        %v1161 = vsel %vm680, 1, 0
        %v1162 = vsel %vm681, 1, 0
        %v1163 = vsel %vm682, 1, 0
        %v1164 = vsel %vm683, 1, 0
        %v1165 = vcvt.s32.f32 %v1149
        %v1166 = vcvt.s32.f32 %v1150
        %v1167 = vcvt.s32.f32 %v1151
        %v1168 = vcvt.s32.f32 %v1152
        %v1169 = vcvt.s32.f32 %v1153
        %v1170 = vcvt.s32.f32 %v1154
        %v1171 = vcvt.s32.f32 %v1155
        %v1172 = vcvt.s32.f32 %v1156
        %v1173 = vcvt.s32.f32 %v1157
        %v1174 = vcvt.s32.f32 %v1158
        %v1175 = vcvt.s32.f32 %v1159
        %v1176 = vcvt.s32.f32 %v1160
        %v1177 = vcvt.s32.f32 %v1161
        %v1178 = vcvt.s32.f32 %v1162
        %v1179 = vcvt.s32.f32 %v1163
        %v1180 = vcvt.s32.f32 %v1164
        %1181 = vadd.xlane.f32.xlu0 %v1165
        %v1182 = vpop.xlane.xlu0 %1181
        %1183 = vadd.xlane.f32.xlu0 %v1166
        %v1184 = vpop.xlane.xlu0 %1183
        %1185 = vadd.xlane.f32.xlu0 %v1167
        %v1186 = vpop.xlane.xlu0 %1185
        %1187 = vadd.xlane.f32.xlu0 %v1168
        %v1188 = vpop.xlane.xlu0 %1187
        %1189 = vadd.xlane.f32.xlu0 %v1169
        %v1190 = vpop.xlane.xlu0 %1189
        %1191 = vadd.xlane.f32.xlu0 %v1170
        %v1192 = vpop.xlane.xlu0 %1191
        %1193 = vadd.xlane.f32.xlu0 %v1171
        %v1194 = vpop.xlane.xlu0 %1193
        %1195 = vadd.xlane.f32.xlu0 %v1172
        %v1196 = vpop.xlane.xlu0 %1195
        %1197 = vadd.xlane.f32.xlu0 %v1173
        %v1198 = vpop.xlane.xlu0 %1197
        %1199 = vadd.xlane.f32.xlu0 %v1174
        %v1200 = vpop.xlane.xlu0 %1199
        %1201 = vadd.xlane.f32.xlu0 %v1175
        %v1202 = vpop.xlane.xlu0 %1201
        %1203 = vadd.xlane.f32.xlu0 %v1176
        %v1204 = vpop.xlane.xlu0 %1203
        %1205 = vadd.xlane.f32.xlu0 %v1177
        %v1206 = vpop.xlane.xlu0 %1205
        %1207 = vadd.xlane.f32.xlu0 %v1178
        %v1208 = vpop.xlane.xlu0 %1207
        %1209 = vadd.xlane.f32.xlu0 %v1179
        %v1210 = vpop.xlane.xlu0 %1209
        %1211 = vadd.xlane.f32.xlu0 %v1180
        %v1212 = vpop.xlane.xlu0 %1211
        %v1213 = vadd.f32 %v1133, %v1182
        %v1214 = vadd.f32 %v1134, %v1184
        %v1215 = vadd.f32 %v1135, %v1186
        %v1216 = vadd.f32 %v1136, %v1188
        %v1217 = vadd.f32 %v1137, %v1190
        %v1218 = vadd.f32 %v1138, %v1192
        %v1219 = vadd.f32 %v1139, %v1194
        %v1220 = vadd.f32 %v1140, %v1196
        %v1221 = vadd.f32 %v1141, %v1198
        %v1222 = vadd.f32 %v1142, %v1200
        %v1223 = vadd.f32 %v1143, %v1202
        %v1224 = vadd.f32 %v1144, %v1204
        %v1225 = vadd.f32 %v1145, %v1206
        %v1226 = vadd.f32 %v1146, %v1208
        %v1227 = vadd.f32 %v1147, %v1210
        %v1228 = vadd.f32 %v1148, %v1212
        %1229 = vst.msk [vmem:[#allocation5] sm:$0xff] %vm1004, %v1213
        %1230 = vst.msk [vmem:[#allocation5 + $0x8] sm:$0xff] %vm1004, %v1214
        %1231 = vst.msk [vmem:[#allocation5 + $0x10] sm:$0xff] %vm1004, %v1215
        %1232 = vst.msk [vmem:[#allocation5 + $0x18] sm:$0xff] %vm1004, %v1216
        %1233 = vst.msk [vmem:[#allocation5 + $0x20] sm:$0xff] %vm1004, %v1217
        %1234 = vst.msk [vmem:[#allocation5 + $0x28] sm:$0xff] %vm1004, %v1218
        %1235 = vst.msk [vmem:[#allocation5 + $0x30] sm:$0xff] %vm1004, %v1219
        %1236 = vst.msk [vmem:[#allocation5 + $0x38] sm:$0xff] %vm1004, %v1220
        %1237 = vst.msk [vmem:[#allocation5 + $0x40] sm:$0xff] %vm1004, %v1221
        %1238 = vst.msk [vmem:[#allocation5 + $0x48] sm:$0xff] %vm1004, %v1222
        %1239 = vst.msk [vmem:[#allocation5 + $0x50] sm:$0xff] %vm1004, %v1223
        %1240 = vst.msk [vmem:[#allocation5 + $0x58] sm:$0xff] %vm1004, %v1224
        %1241 = vst.msk [vmem:[#allocation5 + $0x60] sm:$0xff] %vm1004, %v1225
        %1242 = vst.msk [vmem:[#allocation5 + $0x68] sm:$0xff] %vm1004, %v1226
        %1243 = vst.msk [vmem:[#allocation5 + $0x70] sm:$0xff] %vm1004, %v1227
        %1244 = vst.msk [vmem:[#allocation5 + $0x78] sm:$0xff] %vm1004, %v1228
        %p1245 = scmp.eq.s32.totalorder %s20, 1
        // Predicated region
        $region79: #{supervised_contrastive_loss.3} parent=69 // pred_check
          %p1246 = pneg %p1245
        $region80: #{supervised_contrastive_loss.3} parent=69 // pred_check_branch
          %1248 = sbr.rel (%p1246) target = $region82
        $region81: #{supervised_contrastive_loss.3} parent=69 // pred_region
          %v1249 = vld [vmem:[#allocation2] sm:$0xff]
          %v1250 = vld [vmem:[#allocation2 + $0x8] sm:$0xff]
          %v1251 = vld [vmem:[#allocation2 + $0x10] sm:$0xff]
          %v1252 = vld [vmem:[#allocation2 + $0x18] sm:$0xff]
          %v1253 = vld [vmem:[#allocation2 + $0x20] sm:$0xff]
          %v1254 = vld [vmem:[#allocation2 + $0x28] sm:$0xff]
          %v1255 = vld [vmem:[#allocation2 + $0x30] sm:$0xff]
          %v1256 = vld [vmem:[#allocation2 + $0x38] sm:$0xff]
          %v1257 = vld [vmem:[#allocation2 + $0x40] sm:$0xff]
          %v1258 = vld [vmem:[#allocation2 + $0x48] sm:$0xff]
          %v1259 = vld [vmem:[#allocation2 + $0x50] sm:$0xff]
          %v1260 = vld [vmem:[#allocation2 + $0x58] sm:$0xff]
          %v1261 = vld [vmem:[#allocation2 + $0x60] sm:$0xff]
          %v1262 = vld [vmem:[#allocation2 + $0x68] sm:$0xff]
          %v1263 = vld [vmem:[#allocation2 + $0x70] sm:$0xff]
          %v1264 = vld [vmem:[#allocation2 + $0x78] sm:$0xff]
          %v1265 = vld [vmem:[#allocation3] sm:$0xff]
          %v1266 = vld [vmem:[#allocation3 + $0x8] sm:$0xff]
          %v1267 = vld [vmem:[#allocation3 + $0x10] sm:$0xff]
          %v1268 = vld [vmem:[#allocation3 + $0x18] sm:$0xff]
          %v1269 = vld [vmem:[#allocation3 + $0x20] sm:$0xff]
          %v1270 = vld [vmem:[#allocation3 + $0x28] sm:$0xff]
          %v1271 = vld [vmem:[#allocation3 + $0x30] sm:$0xff]
          %v1272 = vld [vmem:[#allocation3 + $0x38] sm:$0xff]
          %v1273 = vld [vmem:[#allocation3 + $0x40] sm:$0xff]
          %v1274 = vld [vmem:[#allocation3 + $0x48] sm:$0xff]
          %v1275 = vld [vmem:[#allocation3 + $0x50] sm:$0xff]
          %v1276 = vld [vmem:[#allocation3 + $0x58] sm:$0xff]
          %v1277 = vld [vmem:[#allocation3 + $0x60] sm:$0xff]
          %v1278 = vld [vmem:[#allocation3 + $0x68] sm:$0xff]
          %v1279 = vld [vmem:[#allocation3 + $0x70] sm:$0xff]
          %v1280 = vld [vmem:[#allocation3 + $0x78] sm:$0xff]
          %v1281 = vlog2.pop %v1265
          %v1282 = vmul.f32 %v1281, 0.6931472
          %v1283 = vlog2.pop %v1266
          %v1284 = vmul.f32 %v1283, 0.6931472
          %v1285 = vlog2.pop %v1267
          %v1286 = vmul.f32 %v1285, 0.6931472
          %v1287 = vlog2.pop %v1268
          %v1288 = vmul.f32 %v1287, 0.6931472
          %v1289 = vlog2.pop %v1269
          %v1290 = vmul.f32 %v1289, 0.6931472
          %v1291 = vlog2.pop %v1270
          %v1292 = vmul.f32 %v1291, 0.6931472
          %v1293 = vlog2.pop %v1271
          %v1294 = vmul.f32 %v1293, 0.6931472
          %v1295 = vlog2.pop %v1272
          %v1296 = vmul.f32 %v1295, 0.6931472
          %v1297 = vlog2.pop %v1273
          %v1298 = vmul.f32 %v1297, 0.6931472
          %v1299 = vlog2.pop %v1274
          %v1300 = vmul.f32 %v1299, 0.6931472
          %v1301 = vlog2.pop %v1275
          %v1302 = vmul.f32 %v1301, 0.6931472
          %v1303 = vlog2.pop %v1276
          %v1304 = vmul.f32 %v1303, 0.6931472
          %v1305 = vlog2.pop %v1277
          %v1306 = vmul.f32 %v1305, 0.6931472
          %v1307 = vlog2.pop %v1278
          %v1308 = vmul.f32 %v1307, 0.6931472
          %v1309 = vlog2.pop %v1279
          %v1310 = vmul.f32 %v1309, 0.6931472
          %v1311 = vlog2.pop %v1280
          %v1312 = vmul.f32 %v1311, 0.6931472
          %v1313 = vadd.f32 %v1249, %v1282
          %v1314 = vadd.f32 %v1250, %v1284
          %v1315 = vadd.f32 %v1251, %v1286
          %v1316 = vadd.f32 %v1252, %v1288
          %v1317 = vadd.f32 %v1253, %v1290
          %v1318 = vadd.f32 %v1254, %v1292
          %v1319 = vadd.f32 %v1255, %v1294
          %v1320 = vadd.f32 %v1256, %v1296
          %v1321 = vadd.f32 %v1257, %v1298
          %v1322 = vadd.f32 %v1258, %v1300
          %v1323 = vadd.f32 %v1259, %v1302
          %v1324 = vadd.f32 %v1260, %v1304
          %v1325 = vadd.f32 %v1261, %v1306
          %v1326 = vadd.f32 %v1262, %v1308
          %v1327 = vadd.f32 %v1263, %v1310
          %v1328 = vadd.f32 %v1264, %v1312
          %v1329 = vld [vmem:[#allocation4] sm:$0xff]
          %v1330 = vld [vmem:[#allocation4 + $0x8] sm:$0xff]
          %v1331 = vld [vmem:[#allocation4 + $0x10] sm:$0xff]
          %v1332 = vld [vmem:[#allocation4 + $0x18] sm:$0xff]
          %v1333 = vld [vmem:[#allocation4 + $0x20] sm:$0xff]
          %v1334 = vld [vmem:[#allocation4 + $0x28] sm:$0xff]
          %v1335 = vld [vmem:[#allocation4 + $0x30] sm:$0xff]
          %v1336 = vld [vmem:[#allocation4 + $0x38] sm:$0xff]
          %v1337 = vld [vmem:[#allocation4 + $0x40] sm:$0xff]
          %v1338 = vld [vmem:[#allocation4 + $0x48] sm:$0xff]
          %v1339 = vld [vmem:[#allocation4 + $0x50] sm:$0xff]
          %v1340 = vld [vmem:[#allocation4 + $0x58] sm:$0xff]
          %v1341 = vld [vmem:[#allocation4 + $0x60] sm:$0xff]
          %v1342 = vld [vmem:[#allocation4 + $0x68] sm:$0xff]
          %v1343 = vld [vmem:[#allocation4 + $0x70] sm:$0xff]
          %v1344 = vld [vmem:[#allocation4 + $0x78] sm:$0xff]
          %v1345 = vld [vmem:[#allocation5] sm:$0xff]
          %v1346 = vld [vmem:[#allocation5 + $0x8] sm:$0xff]
          %v1347 = vld [vmem:[#allocation5 + $0x10] sm:$0xff]
          %v1348 = vld [vmem:[#allocation5 + $0x18] sm:$0xff]
          %v1349 = vld [vmem:[#allocation5 + $0x20] sm:$0xff]
          %v1350 = vld [vmem:[#allocation5 + $0x28] sm:$0xff]
          %v1351 = vld [vmem:[#allocation5 + $0x30] sm:$0xff]
          %v1352 = vld [vmem:[#allocation5 + $0x38] sm:$0xff]
          %v1353 = vld [vmem:[#allocation5 + $0x40] sm:$0xff]
          %v1354 = vld [vmem:[#allocation5 + $0x48] sm:$0xff]
          %v1355 = vld [vmem:[#allocation5 + $0x50] sm:$0xff]
          %v1356 = vld [vmem:[#allocation5 + $0x58] sm:$0xff]
          %v1357 = vld [vmem:[#allocation5 + $0x60] sm:$0xff]
          %v1358 = vld [vmem:[#allocation5 + $0x68] sm:$0xff]
          %v1359 = vld [vmem:[#allocation5 + $0x70] sm:$0xff]
          %v1360 = vld [vmem:[#allocation5 + $0x78] sm:$0xff]
          %v1361 = vrcp.pop %v1345
          %v1362 = vmul.f32 %v1329, %v1361
          %v1363 = vrcp.pop %v1346
          %v1364 = vmul.f32 %v1330, %v1363
          %v1365 = vrcp.pop %v1347
          %v1366 = vmul.f32 %v1331, %v1365
          %v1367 = vrcp.pop %v1348
          %v1368 = vmul.f32 %v1332, %v1367
          %v1369 = vrcp.pop %v1349
          %v1370 = vmul.f32 %v1333, %v1369
          %v1371 = vrcp.pop %v1350
          %v1372 = vmul.f32 %v1334, %v1371
          %v1373 = vrcp.pop %v1351
          %v1374 = vmul.f32 %v1335, %v1373
          %v1375 = vrcp.pop %v1352
          %v1376 = vmul.f32 %v1336, %v1375
          %v1377 = vrcp.pop %v1353
          %v1378 = vmul.f32 %v1337, %v1377
          %v1379 = vrcp.pop %v1354
          %v1380 = vmul.f32 %v1338, %v1379
          %v1381 = vrcp.pop %v1355
          %v1382 = vmul.f32 %v1339, %v1381
          %v1383 = vrcp.pop %v1356
          %v1384 = vmul.f32 %v1340, %v1383
          %v1385 = vrcp.pop %v1357
          %v1386 = vmul.f32 %v1341, %v1385
          %v1387 = vrcp.pop %v1358
          %v1388 = vmul.f32 %v1342, %v1387
          %v1389 = vrcp.pop %v1359
          %v1390 = vmul.f32 %v1343, %v1389
          %v1391 = vrcp.pop %v1360
          %v1392 = vmul.f32 %v1344, %v1391
          %v1393 = vsub.f32 %v1313, %v1362
          %v1394 = vsub.f32 %v1314, %v1364
          %v1395 = vsub.f32 %v1315, %v1366
          %v1396 = vsub.f32 %v1316, %v1368
          %v1397 = vsub.f32 %v1317, %v1370
          %v1398 = vsub.f32 %v1318, %v1372
          %v1399 = vsub.f32 %v1319, %v1374
          %v1400 = vsub.f32 %v1320, %v1376
          %v1401 = vsub.f32 %v1321, %v1378
          %v1402 = vsub.f32 %v1322, %v1380
          %v1403 = vsub.f32 %v1323, %v1382
          %v1404 = vsub.f32 %v1324, %v1384
          %v1405 = vsub.f32 %v1325, %v1386
          %v1406 = vsub.f32 %v1326, %v1388
          %v1407 = vsub.f32 %v1327, %v1390
          %v1408 = vsub.f32 %v1328, %v1392
          %1409 = vst.msk [vmem:[%s314] sm:$0xff] %vm1004, %v1393
          %1410 = vst.msk [vmem:[%s314 + $0x8] sm:$0xff] %vm1004, %v1394
          %1411 = vst.msk [vmem:[%s314 + $0x10] sm:$0xff] %vm1004, %v1395
          %1412 = vst.msk [vmem:[%s314 + $0x18] sm:$0xff] %vm1004, %v1396
          %1413 = vst.msk [vmem:[%s314 + $0x20] sm:$0xff] %vm1004, %v1397
          %1414 = vst.msk [vmem:[%s314 + $0x28] sm:$0xff] %vm1004, %v1398
          %1415 = vst.msk [vmem:[%s314 + $0x30] sm:$0xff] %vm1004, %v1399
          %1416 = vst.msk [vmem:[%s314 + $0x38] sm:$0xff] %vm1004, %v1400
          %1417 = vst.msk [vmem:[%s314 + $0x40] sm:$0xff] %vm1004, %v1401
          %1418 = vst.msk [vmem:[%s314 + $0x48] sm:$0xff] %vm1004, %v1402
          %1419 = vst.msk [vmem:[%s314 + $0x50] sm:$0xff] %vm1004, %v1403
          %1420 = vst.msk [vmem:[%s314 + $0x58] sm:$0xff] %vm1004, %v1404
          %1421 = vst.msk [vmem:[%s314 + $0x60] sm:$0xff] %vm1004, %v1405
          %1422 = vst.msk [vmem:[%s314 + $0x68] sm:$0xff] %vm1004, %v1406
          %1423 = vst.msk [vmem:[%s314 + $0x70] sm:$0xff] %vm1004, %v1407
          %1424 = vst.msk [vmem:[%s314 + $0x78] sm:$0xff] %vm1004, %v1408
        $region82: #{supervised_contrastive_loss.3} parent=69 // pred_fallthru
          _
        %s1425 = smul.u32 16, %s19
        %p1426 = scmp.lt.s32.totalorder %s1425, 31
        %s1427 = scalar_select %p1426, %s1425, 31
        %s1428 = smul.addr %s1427, 8
        %s1429 = scalar_lea.vmem %s4, %s1428
        // Predicated region
        $region83: #{supervised_contrastive_loss.3} parent=69 // pred_check
          %p1430 = pneg %p149
        $region84: #{supervised_contrastive_loss.3} parent=69 // pred_check_branch
          %1432 = sbr.rel (%p1430) target = $region86
        $region85: #{supervised_contrastive_loss.3} parent=69 // pred_region
          %s1433 = smul.u32 16, %s19
        $region86: #{supervised_contrastive_loss.3} parent=69 // pred_fallthru
          _
      $region70: #{supervised_contrastive_loss.3} parent=5 // pred_fallthru
        _
      %p1434 = scmp.le.s32.totalorder 2, %s10
      // Predicated region
      $region87: #{supervised_contrastive_loss.3} parent=5 // pred_check
        %p1435 = pneg %p1434
      $region88: #{supervised_contrastive_loss.3} parent=5 // pred_check_branch
        %1437 = sbr.rel (%p1435) target = $region90
      $region89: #{supervised_contrastive_loss.3} parent=5 // pred_region
        %s1438 = ssub.s32 %s10, 2
        // Predicated region
        $region91: #{supervised_contrastive_loss.3} parent=89 // pred_check
          %p1439 = pneg %p155
        $region92: #{supervised_contrastive_loss.3} parent=89 // pred_check_branch
          %1441 = sbr.rel (%p1439) target = $region94
        $region93: #{supervised_contrastive_loss.3} parent=89 // pred_region
          %s1442 = smul.u32 16, %s21
          %p1443 = scmp.lt.s32.totalorder %s1442, 31
          %s1444 = scalar_select %p1443, %s1442, 31
          %s1445 = smul.addr %s1444, 8
          %s1446 = scalar_lea.vmem %s4, %s1445
        $region94: #{supervised_contrastive_loss.3} parent=89 // pred_fallthru
          _
      $region90: #{supervised_contrastive_loss.3} parent=5 // pred_fallthru
        _
    $region6: #{supervised_contrastive_loss.3} parent=1 // loop_footer
      %s14 = sadd.s32 1, %s10
    $region7: #{supervised_contrastive_loss.3} parent=1 // loop_footer_branch
      %9 = sbr.rel target = $region3
    $region8: #{supervised_contrastive_loss.3} parent=1 // loop_exit
      _

</llo_original>
